<compile_context>
chip_gen: v7x
topology: tpu7x:2x2x1
jax: 0.10.0
libtpu: 0.0.40
codegen_flags: <defaults>
</compile_context>

<pallas_src>
import jax
import jax.numpy as jnp
import numpy as np
from jax import lax
from jax.experimental import pallas as pl
from jax.experimental.pallas import tpu as pltpu


# -----------------------------------------------------------------------------
# Fused kernel: ln1 -> pconv1(1x1) -> ln2 -> pconv2(1x1) -> +input -> pconv3(2x2/s2/p1)
# -----------------------------------------------------------------------------
def _restrictive_block_kernel(x_ref, g1_ref, b1_ref, g2_ref, b2_ref,
                              w3_ref, w1_ref, w2_ref, o_ref):
    """Pixel-major fused block (all float32).

      x_ref : (Nb, C, P)      P = H*W (lane-dense, multiple of 128)
      g*_ref: (C, P)          LayerNorm affine params
      w3_ref: (Cout, C, P)    pconv3 per-pixel weights (tap + border ratio folded in)
      w1/w2 : (C, C)  [SMEM]  1x1 conv weights (out, in); partial-conv ratio folded in
      o_ref : (Nb, Cout, P)   per-input-pixel pconv3 contributions
    """
    Nb, C, P = x_ref.shape
    Cout = o_ref.shape[1]
    inv_cnt = 1.0 / (C * P)

    # Hoisted parameter loads, shared across the (unrolled) batch loop.
    g1 = g1_ref[...]
    b1 = b1_ref[...]
    g2 = g2_ref[...]
    b2 = b2_ref[...]
    w3 = w3_ref[...]

    def layer_norm(v, g, b):
        # Statistics over the whole (C, H, W) slab of one sample.  The two reductions
        # are independent (they overlap); var is clamped to guard the one-pass formula.
        s = jnp.sum(v)
        sq = jnp.sum(v * v)
        m = s * inv_cnt
        var = jnp.maximum(sq * inv_cnt - m * m, 0.0)
        return (v - m) * (lax.rsqrt(var + 1e-5) * g) + b

    def conv1x1(v, w_ref, res=None):
        # C=4 channel mix as unrolled scalar-weight FMAs (weights read from SMEM):
        # pure VALU work, no weight vregs, no XLU reduce, no MXU.
        rows = []
        for o in range(C):
            acc = w_ref[o, 0] * v[0:1, :]
            for i in range(1, C):
                acc = acc + w_ref[o, i] * v[i:i + 1, :]
            if res is not None:
                acc = acc + res[o:o + 1, :]          # fused residual add
            rows.append(acc)
        return jnp.concatenate(rows, axis=0)          # (C, P)

    for n in range(Nb):                   # Nb is 1 (grid mode) or the tiny batch
        x0 = x_ref[n]                     # (C, P)
        h = layer_norm(x0, g1, b1)
        h = conv1x1(h, w1_ref)            # pconv1 (all-ones-mask ratio folded into w1)
        h = layer_norm(h, g2, b2)
        h = conv1x1(h, w2_ref, res=x0)    # pconv2 + residual with the block input

        # pconv3: every input pixel contributes to exactly one output pixel via exactly
        # one kernel tap; w3 already folds the tap choice and the partial-conv border
        # renormalization, so this is a per-lane Cin->Cout mix.
        out_rows = []
        for o in range(Cout):
            w3o = w3[o]                                       # (C, P)
            acc = w3o[0:1, :] * h[0:1, :]
            for i in range(1, C):
                acc = acc + w3o[i:i + 1, :] * h[i:i + 1, :]
            out_rows.append(acc)
        o_ref[n] = jnp.concatenate(out_rows, axis=0)          # one lane-dense (Cout,P) store


# -----------------------------------------------------------------------------
# One-time parameter preprocessing (hoisted out of the per-call forward)
# -----------------------------------------------------------------------------
def prepare_params(params):
    g1, b1, w1, g2, b2, w2, w3 = (params[k] for k in
                                  ("g1", "b1", "w1", "g2", "b2", "w2", "w3"))
    C, H, W = g1.shape
    Cout = w3.shape[0]
    Ho, Wo = H // 2 + 1, W // 2 + 1
    P = H * W

    # pconv1/pconv2: 1x1 with all-ones mask -> output scale 1/(1+1e-8), folded into W.
    r = 1.0 / (1.0 + 1e-8)
    w1s = (w1[:, :, 0, 0] * r).astype(jnp.float32)            # (C, C)
    w2s = (w2[:, :, 0, 0] * r).astype(jnp.float32)

    # pconv3 (k=s=2, pad=1): input pixel (h, w) pairs with kernel tap (1-h%2, 1-w%2) of
    # output pixel ((h+1)//2, (w+1)//2).  Fold the tap selection and that output pixel's
    # mask renormalization ratio (input-independent for all-ones masks) into a per-lane
    # weight tensor of shape (Cout, C, P).
    hh, ww = jnp.arange(H), jnp.arange(W)
    kr, kc = 1 - (hh % 2), 1 - (ww % 2)
    orow, ocol = (hh + 1) // 2, (ww + 1) // 2
    row_cnt = jnp.where((jnp.arange(Ho) >= 1) & (jnp.arange(Ho) <= Ho - 2), 2.0, 1.0)
    col_cnt = jnp.where((jnp.arange(Wo) >= 1) & (jnp.arange(Wo) <= Wo - 2), 2.0, 1.0)
    ratio = 4.0 / (row_cnt[:, None] * col_cnt[None, :] + 1e-8)          # (Ho, Wo)
    ratio_pix = ratio[orow[:, None], ocol[None, :]]                      # (H, W)
    w3_tap = w3[:, :, kr[:, None], kc[None, :]]                          # (Cout, C, H, W)
    w3r = (w3_tap * ratio_pix[None, None]).reshape(Cout, C, P).astype(jnp.float32)

    return dict(
        g1=g1.reshape(C, P).astype(jnp.float32),
        b1=b1.reshape(C, P).astype(jnp.float32),
        g2=g2.reshape(C, P).astype(jnp.float32),
        b2=b2.reshape(C, P).astype(jnp.float32),
        w1=w1s, w2=w2s, w3=w3r,
    )


def _has_multiple_tensorcores():
    # v7x has 2 TensorCores per chip -> shard the batch grid across them; v5e/v6e have
    # one TC, where a grid is just a serial loop with per-step overhead -> gridless.
    try:
        kind = (getattr(jax.devices()[0], "device_kind", "") or "").lower()
    except Exception:
        return False
    return ("v7" in kind) or ("tpu7" in kind.replace(" ", ""))


# -----------------------------------------------------------------------------
# Wrapper: RestrictiveBlock.forward(input, mask=None)
# -----------------------------------------------------------------------------
def restrictive_block_forward(x, prep, *, batch_parallel=None):
    """x: (N, C, H, W) float32, prep: output of prepare_params.
    Returns (out (N, Cout, H//2+1, W//2+1), mask (1, 1, Ho, Wo))."""
    N, C, H, W = x.shape
    assert H % 2 == 0 and W % 2 == 0
    P = H * W
    Cout = prep["w3"].shape[0]
    Ho, Wo = H // 2 + 1, W // 2 + 1

    x_p = x.reshape(N, C, P).astype(jnp.float32)     # free reshape, no transpose

    if batch_parallel is None:
        batch_parallel = _has_multiple_tensorcores()

    out_shape = jax.ShapeDtypeStruct((N, Cout, P), jnp.float32)
    args = (x_p, prep["g1"], prep["b1"], prep["g2"], prep["b2"],
            prep["w3"], prep["w1"], prep["w2"])
    vmem = pl.BlockSpec(memory_space=pltpu.MemorySpace.VMEM)
    smem = pl.BlockSpec(memory_space=pltpu.MemorySpace.SMEM)

    if batch_parallel and N > 1:
        # v7x: shard the batch over the two TensorCores.
        grid_spec = pltpu.PrefetchScalarGridSpec(
            num_scalar_prefetch=0, grid=(N,),
            in_specs=[
                pl.BlockSpec((1, C, P), lambda n: (n, 0, 0)),
                pl.BlockSpec((C, P), lambda n: (0, 0)),
                pl.BlockSpec((C, P), lambda n: (0, 0)),
                pl.BlockSpec((C, P), lambda n: (0, 0)),
                pl.BlockSpec((C, P), lambda n: (0, 0)),
                pl.BlockSpec((Cout, C, P), lambda n: (0, 0, 0)),
                smem, smem,
            ],
            out_specs=pl.BlockSpec((1, Cout, P), lambda n: (n, 0, 0)),
        )
        contrib = pl.pallas_call(
            _restrictive_block_kernel,
            out_shape=out_shape,
            grid_spec=grid_spec,
            compiler_params=pltpu.CompilerParams(dimension_semantics=("parallel",)),
        )(*args)
    else:
        # v5e/v6e: single program, batch unrolled inside the kernel.
        contrib = pl.pallas_call(
            _restrictive_block_kernel,
            out_shape=out_shape,
            in_specs=[vmem] * 6 + [smem, smem],
            out_specs=vmem,
        )(*args)

    # Interleave the per-input-pixel contributions into the (Ho, Wo) output: output
    # pixel (r, c) sums the (up to 4) input pixels in rows {2r-1, 2r}, cols {2c-1, 2c}.
    # ~5 KB of pure placement, kept in XLA to avoid unaligned 9-wide stores in-kernel.
    contrib = contrib.reshape(N, Cout, H, W)
    padded = jnp.pad(contrib, ((0, 0), (0, 0), (1, 1), (1, 1)))
    out = padded.reshape(N, Cout, Ho, 2, Wo, 2).sum(axis=(3, 5))

    # pconv3's returned update-mask: clamp(conv2d(ones, ones(2,2), s=2, p=1), 0, 1) == 1.
    mask_out = jnp.ones((1, 1, Ho, Wo), jnp.float32)
    return out, mask_out


# -----------------------------------------------------------------------------
# Pure-JAX reference (for correctness check)
# -----------------------------------------------------------------------------
def _ref_forward(x, params):
    g1, b1, w1, g2, b2, w2, w3 = (params[k] for k in
                                  ("g1", "b1", "w1", "g2", "b2", "w2", "w3"))
    N, C, H, W = x.shape
    dn = ("NCHW", "OIHW", "NCHW")
    hp = lax.Precision.HIGHEST

    def ln(v, g, b):
        m = v.mean(axis=(1, 2, 3), keepdims=True)
        var = ((v - m) ** 2).mean(axis=(1, 2, 3), keepdims=True)
        return (v - m) / jnp.sqrt(var + 1e-5) * g[None] + b[None]

    r = 1.0 / (1.0 + 1e-8)
    h = ln(x, g1, b1)
    h = lax.conv_general_dilated(h, w1, (1, 1), "VALID", dimension_numbers=dn,
                                 precision=hp) * r
    h = ln(h, g2, b2)
    h = lax.conv_general_dilated(h, w2, (1, 1), "VALID", dimension_numbers=dn,
                                 precision=hp) * r
    h = h + x

    mask = jnp.ones((1, 1, H, W), jnp.float32)
    wm = jnp.ones((1, 1, 2, 2), jnp.float32)
    um = lax.conv_general_dilated(mask, wm, (2, 2), ((1, 1), (1, 1)),
                                  dimension_numbers=dn, precision=hp)
    umc = jnp.clip(um, 0.0, 1.0)
    ratio = (4.0 / (um + 1e-8)) * umc
    raw = lax.conv_general_dilated(h * mask, w3, (2, 2), ((1, 1), (1, 1)),
                                   dimension_numbers=dn, precision=hp)
    return raw * ratio, umc


# -----------------------------------------------------------------------------
# Main
# -----------------------------------------------------------------------------
if __name__ == "__main__":
    N, C, Cout, H, W = 2, 4, 8, 16, 16

    key = jax.random.PRNGKey(0)
    k = jax.random.split(key, 8)
    params = {
        "g1": 1.0 + 0.1 * jax.random.normal(k[0], (C, H, W), jnp.float32),
        "b1": 0.1 * jax.random.normal(k[1], (C, H, W), jnp.float32),
        "w1": jax.random.normal(k[2], (C, C, 1, 1), jnp.float32) / np.sqrt(C),
        "g2": 1.0 + 0.1 * jax.random.normal(k[3], (C, H, W), jnp.float32),
        "b2": 0.1 * jax.random.normal(k[4], (C, H, W), jnp.float32),
        "w2": jax.random.normal(k[5], (C, C, 1, 1), jnp.float32) / np.sqrt(C),
        "w3": jax.random.normal(k[6], (Cout, C, 2, 2), jnp.float32) / np.sqrt(C * 4),
    }
    x = jax.random.normal(k[7], (N, C, H, W), jnp.float32)

    prep = prepare_params(params)            # one-time, hoisted out of the call path
    fwd = jax.jit(restrictive_block_forward)
    out, mask = fwd(x, prep)
    out, mask = jax.block_until_ready((out, mask))

    assert out.shape == (N, Cout, H // 2 + 1, W // 2 + 1)
    assert mask.shape == (1, 1, H // 2 + 1, W // 2 + 1)

    ref_out, ref_mask = _ref_forward(x, params)
    np.testing.assert_allclose(np.asarray(out), np.asarray(ref_out),
                               atol=2e-3, rtol=2e-3)
    np.testing.assert_allclose(np.asarray(mask), np.asarray(ref_mask),
                               atol=1e-6, rtol=1e-6)

    print("KERNEL_OK")
</pallas_src>

<mosaic_0001>
module attributes {stable_mosaic.version = 11 : i64} {
  func.func @_restrictive_block_kernel(%arg0: memref<2x4x256xf32, #tpu.memory_space<vmem>>, %arg1: memref<4x256xf32, #tpu.memory_space<vmem>>, %arg2: memref<4x256xf32, #tpu.memory_space<vmem>>, %arg3: memref<4x256xf32, #tpu.memory_space<vmem>>, %arg4: memref<4x256xf32, #tpu.memory_space<vmem>>, %arg5: memref<8x4x256xf32, #tpu.memory_space<vmem>>, %arg6: memref<4x4xf32, #tpu.memory_space<smem>>, %arg7: memref<4x4xf32, #tpu.memory_space<smem>>, %arg8: memref<2x8x256xf32, #tpu.memory_space<vmem>>) attributes {dimension_semantics = [], scalar_prefetch = 0 : i64, scratch_operands = 0 : i64, tpu.core_type = #tpu.core_type<tc>} {
    %c0 = arith.constant 0 : index
    %c0_0 = arith.constant 0 : index
    %0 = vector.load %arg1[%c0, %c0_0] : memref<4x256xf32, #tpu.memory_space<vmem>>, vector<4x256xf32>
    %c0_1 = arith.constant 0 : index
    %c0_2 = arith.constant 0 : index
    %1 = vector.load %arg2[%c0_1, %c0_2] : memref<4x256xf32, #tpu.memory_space<vmem>>, vector<4x256xf32>
    %c0_3 = arith.constant 0 : index
    %c0_4 = arith.constant 0 : index
    %2 = vector.load %arg3[%c0_3, %c0_4] : memref<4x256xf32, #tpu.memory_space<vmem>>, vector<4x256xf32>
    %c0_5 = arith.constant 0 : index
    %c0_6 = arith.constant 0 : index
    %3 = vector.load %arg4[%c0_5, %c0_6] : memref<4x256xf32, #tpu.memory_space<vmem>>, vector<4x256xf32>
    %c0_7 = arith.constant 0 : index
    %c0_8 = arith.constant 0 : index
    %c0_9 = arith.constant 0 : index
    %4 = vector.load %arg5[%c0_7, %c0_8, %c0_9] : memref<8x4x256xf32, #tpu.memory_space<vmem>>, vector<8x4x256xf32>
    %c0_10 = arith.constant 0 : index
    %c0_11 = arith.constant 0 : index
    %c0_12 = arith.constant 0 : index
    %5 = vector.load %arg0[%c0_10, %c0_11, %c0_12] : memref<2x4x256xf32, #tpu.memory_space<vmem>>, vector<1x4x256xf32>
    %6 = vector.shape_cast %5 : vector<1x4x256xf32> to vector<4x256xf32>
    %7 = vector.shape_cast %6 : vector<4x256xf32> to vector<1x4x256xf32>
    %cst = arith.constant dense<0.000000e+00> : vector<1xf32>
    %8 = vector.multi_reduction <add>, %7, %cst [1, 2] : vector<1x4x256xf32> to vector<1xf32>
    %9 = vector.shape_cast %8 : vector<1xf32> to vector<1x1x1xf32>
    %10 = vector.extract %9[0, 0, 0] : f32 from vector<1x1x1xf32>
    %11 = arith.mulf %6, %6 : vector<4x256xf32>
    %12 = vector.shape_cast %11 : vector<4x256xf32> to vector<1x4x256xf32>
    %cst_13 = arith.constant dense<0.000000e+00> : vector<1xf32>
    %13 = vector.multi_reduction <add>, %12, %cst_13 [1, 2] : vector<1x4x256xf32> to vector<1xf32>
    %14 = vector.shape_cast %13 : vector<1xf32> to vector<1x1x1xf32>
    %15 = vector.extract %14[0, 0, 0] : f32 from vector<1x1x1xf32>
    %cst_14 = arith.constant 9.765625E-4 : f32
    %16 = arith.mulf %10, %cst_14 : f32
    %cst_15 = arith.constant 9.765625E-4 : f32
    %17 = arith.mulf %15, %cst_15 : f32
    %18 = arith.mulf %16, %16 : f32
    %19 = arith.subf %17, %18 : f32
    %cst_16 = arith.constant 0.000000e+00 : f32
    %20 = arith.maximumf %19, %cst_16 : f32
    %21 = vector.broadcast %16 : f32 to vector<4x256xf32>
    %22 = arith.subf %6, %21 : vector<4x256xf32>
    %cst_17 = arith.constant 9.99999974E-6 : f32
    %23 = arith.addf %20, %cst_17 : f32
    %24 = math.rsqrt %23 : f32
    %25 = vector.broadcast %24 : f32 to vector<4x256xf32>
    %26 = arith.mulf %25, %0 : vector<4x256xf32>
    %27 = arith.mulf %22, %26 : vector<4x256xf32>
    %28 = arith.addf %27, %1 : vector<4x256xf32>
    %c0_18 = arith.constant 0 : index
    %c0_19 = arith.constant 0 : index
    %29 = memref.load %arg6[%c0_18, %c0_19] : memref<4x4xf32, #tpu.memory_space<smem>>
    %30 = vector.extract_strided_slice %28 {offsets = [0, 0], sizes = [1, 256], strides = [1, 1]} : vector<4x256xf32> to vector<1x256xf32>
    %31 = vector.broadcast %29 : f32 to vector<1x256xf32>
    %32 = arith.mulf %31, %30 : vector<1x256xf32>
    %c0_20 = arith.constant 0 : index
    %c1 = arith.constant 1 : index
    %33 = memref.load %arg6[%c0_20, %c1] : memref<4x4xf32, #tpu.memory_space<smem>>
    %34 = vector.extract_strided_slice %28 {offsets = [1, 0], sizes = [1, 256], strides = [1, 1]} : vector<4x256xf32> to vector<1x256xf32>
    %35 = vector.broadcast %33 : f32 to vector<1x256xf32>
    %36 = arith.mulf %35, %34 : vector<1x256xf32>
    %37 = arith.addf %32, %36 : vector<1x256xf32>
    %c0_21 = arith.constant 0 : index
    %c2 = arith.constant 2 : index
    %38 = memref.load %arg6[%c0_21, %c2] : memref<4x4xf32, #tpu.memory_space<smem>>
    %39 = vector.extract_strided_slice %28 {offsets = [2, 0], sizes = [1, 256], strides = [1, 1]} : vector<4x256xf32> to vector<1x256xf32>
    %40 = vector.broadcast %38 : f32 to vector<1x256xf32>
    %41 = arith.mulf %40, %39 : vector<1x256xf32>
    %42 = arith.addf %37, %41 : vector<1x256xf32>
    %c0_22 = arith.constant 0 : index
    %c3 = arith.constant 3 : index
    %43 = memref.load %arg6[%c0_22, %c3] : memref<4x4xf32, #tpu.memory_space<smem>>
    %44 = vector.extract_strided_slice %28 {offsets = [3, 0], sizes = [1, 256], strides = [1, 1]} : vector<4x256xf32> to vector<1x256xf32>
    %45 = vector.broadcast %43 : f32 to vector<1x256xf32>
    %46 = arith.mulf %45, %44 : vector<1x256xf32>
    %47 = arith.addf %42, %46 : vector<1x256xf32>
    %c1_23 = arith.constant 1 : index
    %c0_24 = arith.constant 0 : index
    %48 = memref.load %arg6[%c1_23, %c0_24] : memref<4x4xf32, #tpu.memory_space<smem>>
    %49 = vector.extract_strided_slice %28 {offsets = [0, 0], sizes = [1, 256], strides = [1, 1]} : vector<4x256xf32> to vector<1x256xf32>
    %50 = vector.broadcast %48 : f32 to vector<1x256xf32>
    %51 = arith.mulf %50, %49 : vector<1x256xf32>
    %c1_25 = arith.constant 1 : index
    %c1_26 = arith.constant 1 : index
    %52 = memref.load %arg6[%c1_25, %c1_26] : memref<4x4xf32, #tpu.memory_space<smem>>
    %53 = vector.extract_strided_slice %28 {offsets = [1, 0], sizes = [1, 256], strides = [1, 1]} : vector<4x256xf32> to vector<1x256xf32>
    %54 = vector.broadcast %52 : f32 to vector<1x256xf32>
    %55 = arith.mulf %54, %53 : vector<1x256xf32>
    %56 = arith.addf %51, %55 : vector<1x256xf32>
    %c1_27 = arith.constant 1 : index
    %c2_28 = arith.constant 2 : index
    %57 = memref.load %arg6[%c1_27, %c2_28] : memref<4x4xf32, #tpu.memory_space<smem>>
    %58 = vector.extract_strided_slice %28 {offsets = [2, 0], sizes = [1, 256], strides = [1, 1]} : vector<4x256xf32> to vector<1x256xf32>
    %59 = vector.broadcast %57 : f32 to vector<1x256xf32>
    %60 = arith.mulf %59, %58 : vector<1x256xf32>
    %61 = arith.addf %56, %60 : vector<1x256xf32>
    %c1_29 = arith.constant 1 : index
    %c3_30 = arith.constant 3 : index
    %62 = memref.load %arg6[%c1_29, %c3_30] : memref<4x4xf32, #tpu.memory_space<smem>>
    %63 = vector.extract_strided_slice %28 {offsets = [3, 0], sizes = [1, 256], strides = [1, 1]} : vector<4x256xf32> to vector<1x256xf32>
    %64 = vector.broadcast %62 : f32 to vector<1x256xf32>
    %65 = arith.mulf %64, %63 : vector<1x256xf32>
    %66 = arith.addf %61, %65 : vector<1x256xf32>
    %c2_31 = arith.constant 2 : index
    %c0_32 = arith.constant 0 : index
    %67 = memref.load %arg6[%c2_31, %c0_32] : memref<4x4xf32, #tpu.memory_space<smem>>
    %68 = vector.extract_strided_slice %28 {offsets = [0, 0], sizes = [1, 256], strides = [1, 1]} : vector<4x256xf32> to vector<1x256xf32>
    %69 = vector.broadcast %67 : f32 to vector<1x256xf32>
    %70 = arith.mulf %69, %68 : vector<1x256xf32>
    %c2_33 = arith.constant 2 : index
    %c1_34 = arith.constant 1 : index
    %71 = memref.load %arg6[%c2_33, %c1_34] : memref<4x4xf32, #tpu.memory_space<smem>>
    %72 = vector.extract_strided_slice %28 {offsets = [1, 0], sizes = [1, 256], strides = [1, 1]} : vector<4x256xf32> to vector<1x256xf32>
    %73 = vector.broadcast %71 : f32 to vector<1x256xf32>
    %74 = arith.mulf %73, %72 : vector<1x256xf32>
    %75 = arith.addf %70, %74 : vector<1x256xf32>
    %c2_35 = arith.constant 2 : index
    %c2_36 = arith.constant 2 : index
    %76 = memref.load %arg6[%c2_35, %c2_36] : memref<4x4xf32, #tpu.memory_space<smem>>
    %77 = vector.extract_strided_slice %28 {offsets = [2, 0], sizes = [1, 256], strides = [1, 1]} : vector<4x256xf32> to vector<1x256xf32>
    %78 = vector.broadcast %76 : f32 to vector<1x256xf32>
    %79 = arith.mulf %78, %77 : vector<1x256xf32>
    %80 = arith.addf %75, %79 : vector<1x256xf32>
    %c2_37 = arith.constant 2 : index
    %c3_38 = arith.constant 3 : index
    %81 = memref.load %arg6[%c2_37, %c3_38] : memref<4x4xf32, #tpu.memory_space<smem>>
    %82 = vector.extract_strided_slice %28 {offsets = [3, 0], sizes = [1, 256], strides = [1, 1]} : vector<4x256xf32> to vector<1x256xf32>
    %83 = vector.broadcast %81 : f32 to vector<1x256xf32>
    %84 = arith.mulf %83, %82 : vector<1x256xf32>
    %85 = arith.addf %80, %84 : vector<1x256xf32>
    %c3_39 = arith.constant 3 : index
    %c0_40 = arith.constant 0 : index
    %86 = memref.load %arg6[%c3_39, %c0_40] : memref<4x4xf32, #tpu.memory_space<smem>>
    %87 = vector.extract_strided_slice %28 {offsets = [0, 0], sizes = [1, 256], strides = [1, 1]} : vector<4x256xf32> to vector<1x256xf32>
    %88 = vector.broadcast %86 : f32 to vector<1x256xf32>
    %89 = arith.mulf %88, %87 : vector<1x256xf32>
    %c3_41 = arith.constant 3 : index
    %c1_42 = arith.constant 1 : index
    %90 = memref.load %arg6[%c3_41, %c1_42] : memref<4x4xf32, #tpu.memory_space<smem>>
    %91 = vector.extract_strided_slice %28 {offsets = [1, 0], sizes = [1, 256], strides = [1, 1]} : vector<4x256xf32> to vector<1x256xf32>
    %92 = vector.broadcast %90 : f32 to vector<1x256xf32>
    %93 = arith.mulf %92, %91 : vector<1x256xf32>
    %94 = arith.addf %89, %93 : vector<1x256xf32>
    %c3_43 = arith.constant 3 : index
    %c2_44 = arith.constant 2 : index
    %95 = memref.load %arg6[%c3_43, %c2_44] : memref<4x4xf32, #tpu.memory_space<smem>>
    %96 = vector.extract_strided_slice %28 {offsets = [2, 0], sizes = [1, 256], strides = [1, 1]} : vector<4x256xf32> to vector<1x256xf32>
    %97 = vector.broadcast %95 : f32 to vector<1x256xf32>
    %98 = arith.mulf %97, %96 : vector<1x256xf32>
    %99 = arith.addf %94, %98 : vector<1x256xf32>
    %c3_45 = arith.constant 3 : index
    %c3_46 = arith.constant 3 : index
    %100 = memref.load %arg6[%c3_45, %c3_46] : memref<4x4xf32, #tpu.memory_space<smem>>
    %101 = vector.extract_strided_slice %28 {offsets = [3, 0], sizes = [1, 256], strides = [1, 1]} : vector<4x256xf32> to vector<1x256xf32>
    %102 = vector.broadcast %100 : f32 to vector<1x256xf32>
    %103 = arith.mulf %102, %101 : vector<1x256xf32>
    %104 = arith.addf %99, %103 : vector<1x256xf32>
    %105 = tpu.concatenate %47, %66, %85, %104 in 0 : vector<1x256xf32>, vector<1x256xf32>, vector<1x256xf32>, vector<1x256xf32> -> vector<4x256xf32>
    %106 = vector.shape_cast %105 : vector<4x256xf32> to vector<1x4x256xf32>
    %cst_47 = arith.constant dense<0.000000e+00> : vector<1xf32>
    %107 = vector.multi_reduction <add>, %106, %cst_47 [1, 2] : vector<1x4x256xf32> to vector<1xf32>
    %108 = vector.shape_cast %107 : vector<1xf32> to vector<1x1x1xf32>
    %109 = vector.extract %108[0, 0, 0] : f32 from vector<1x1x1xf32>
    %110 = arith.mulf %105, %105 : vector<4x256xf32>
    %111 = vector.shape_cast %110 : vector<4x256xf32> to vector<1x4x256xf32>
    %cst_48 = arith.constant dense<0.000000e+00> : vector<1xf32>
    %112 = vector.multi_reduction <add>, %111, %cst_48 [1, 2] : vector<1x4x256xf32> to vector<1xf32>
    %113 = vector.shape_cast %112 : vector<1xf32> to vector<1x1x1xf32>
    %114 = vector.extract %113[0, 0, 0] : f32 from vector<1x1x1xf32>
    %cst_49 = arith.constant 9.765625E-4 : f32
    %115 = arith.mulf %109, %cst_49 : f32
    %cst_50 = arith.constant 9.765625E-4 : f32
    %116 = arith.mulf %114, %cst_50 : f32
    %117 = arith.mulf %115, %115 : f32
    %118 = arith.subf %116, %117 : f32
    %cst_51 = arith.constant 0.000000e+00 : f32
    %119 = arith.maximumf %118, %cst_51 : f32
    %120 = vector.broadcast %115 : f32 to vector<4x256xf32>
    %121 = arith.subf %105, %120 : vector<4x256xf32>
    %cst_52 = arith.constant 9.99999974E-6 : f32
    %122 = arith.addf %119, %cst_52 : f32
    %123 = math.rsqrt %122 : f32
    %124 = vector.broadcast %123 : f32 to vector<4x256xf32>
    %125 = arith.mulf %124, %2 : vector<4x256xf32>
    %126 = arith.mulf %121, %125 : vector<4x256xf32>
    %127 = arith.addf %126, %3 : vector<4x256xf32>
    %c0_53 = arith.constant 0 : index
    %c0_54 = arith.constant 0 : index
    %128 = memref.load %arg7[%c0_53, %c0_54] : memref<4x4xf32, #tpu.memory_space<smem>>
    %129 = vector.extract_strided_slice %127 {offsets = [0, 0], sizes = [1, 256], strides = [1, 1]} : vector<4x256xf32> to vector<1x256xf32>
    %130 = vector.broadcast %128 : f32 to vector<1x256xf32>
    %131 = arith.mulf %130, %129 : vector<1x256xf32>
    %c0_55 = arith.constant 0 : index
    %c1_56 = arith.constant 1 : index
    %132 = memref.load %arg7[%c0_55, %c1_56] : memref<4x4xf32, #tpu.memory_space<smem>>
    %133 = vector.extract_strided_slice %127 {offsets = [1, 0], sizes = [1, 256], strides = [1, 1]} : vector<4x256xf32> to vector<1x256xf32>
    %134 = vector.broadcast %132 : f32 to vector<1x256xf32>
    %135 = arith.mulf %134, %133 : vector<1x256xf32>
    %136 = arith.addf %131, %135 : vector<1x256xf32>
    %c0_57 = arith.constant 0 : index
    %c2_58 = arith.constant 2 : index
    %137 = memref.load %arg7[%c0_57, %c2_58] : memref<4x4xf32, #tpu.memory_space<smem>>
    %138 = vector.extract_strided_slice %127 {offsets = [2, 0], sizes = [1, 256], strides = [1, 1]} : vector<4x256xf32> to vector<1x256xf32>
    %139 = vector.broadcast %137 : f32 to vector<1x256xf32>
    %140 = arith.mulf %139, %138 : vector<1x256xf32>
    %141 = arith.addf %136, %140 : vector<1x256xf32>
    %c0_59 = arith.constant 0 : index
    %c3_60 = arith.constant 3 : index
    %142 = memref.load %arg7[%c0_59, %c3_60] : memref<4x4xf32, #tpu.memory_space<smem>>
    %143 = vector.extract_strided_slice %127 {offsets = [3, 0], sizes = [1, 256], strides = [1, 1]} : vector<4x256xf32> to vector<1x256xf32>
    %144 = vector.broadcast %142 : f32 to vector<1x256xf32>
    %145 = arith.mulf %144, %143 : vector<1x256xf32>
    %146 = arith.addf %141, %145 : vector<1x256xf32>
    %147 = vector.extract_strided_slice %6 {offsets = [0, 0], sizes = [1, 256], strides = [1, 1]} : vector<4x256xf32> to vector<1x256xf32>
    %148 = arith.addf %146, %147 : vector<1x256xf32>
    %c1_61 = arith.constant 1 : index
    %c0_62 = arith.constant 0 : index
    %149 = memref.load %arg7[%c1_61, %c0_62] : memref<4x4xf32, #tpu.memory_space<smem>>
    %150 = vector.extract_strided_slice %127 {offsets = [0, 0], sizes = [1, 256], strides = [1, 1]} : vector<4x256xf32> to vector<1x256xf32>
    %151 = vector.broadcast %149 : f32 to vector<1x256xf32>
    %152 = arith.mulf %151, %150 : vector<1x256xf32>
    %c1_63 = arith.constant 1 : index
    %c1_64 = arith.constant 1 : index
    %153 = memref.load %arg7[%c1_63, %c1_64] : memref<4x4xf32, #tpu.memory_space<smem>>
    %154 = vector.extract_strided_slice %127 {offsets = [1, 0], sizes = [1, 256], strides = [1, 1]} : vector<4x256xf32> to vector<1x256xf32>
    %155 = vector.broadcast %153 : f32 to vector<1x256xf32>
    %156 = arith.mulf %155, %154 : vector<1x256xf32>
    %157 = arith.addf %152, %156 : vector<1x256xf32>
    %c1_65 = arith.constant 1 : index
    %c2_66 = arith.constant 2 : index
    %158 = memref.load %arg7[%c1_65, %c2_66] : memref<4x4xf32, #tpu.memory_space<smem>>
    %159 = vector.extract_strided_slice %127 {offsets = [2, 0], sizes = [1, 256], strides = [1, 1]} : vector<4x256xf32> to vector<1x256xf32>
    %160 = vector.broadcast %158 : f32 to vector<1x256xf32>
    %161 = arith.mulf %160, %159 : vector<1x256xf32>
    %162 = arith.addf %157, %161 : vector<1x256xf32>
    %c1_67 = arith.constant 1 : index
    %c3_68 = arith.constant 3 : index
    %163 = memref.load %arg7[%c1_67, %c3_68] : memref<4x4xf32, #tpu.memory_space<smem>>
    %164 = vector.extract_strided_slice %127 {offsets = [3, 0], sizes = [1, 256], strides = [1, 1]} : vector<4x256xf32> to vector<1x256xf32>
    %165 = vector.broadcast %163 : f32 to vector<1x256xf32>
    %166 = arith.mulf %165, %164 : vector<1x256xf32>
    %167 = arith.addf %162, %166 : vector<1x256xf32>
    %168 = vector.extract_strided_slice %6 {offsets = [1, 0], sizes = [1, 256], strides = [1, 1]} : vector<4x256xf32> to vector<1x256xf32>
    %169 = arith.addf %167, %168 : vector<1x256xf32>
    %c2_69 = arith.constant 2 : index
    %c0_70 = arith.constant 0 : index
    %170 = memref.load %arg7[%c2_69, %c0_70] : memref<4x4xf32, #tpu.memory_space<smem>>
    %171 = vector.extract_strided_slice %127 {offsets = [0, 0], sizes = [1, 256], strides = [1, 1]} : vector<4x256xf32> to vector<1x256xf32>
    %172 = vector.broadcast %170 : f32 to vector<1x256xf32>
    %173 = arith.mulf %172, %171 : vector<1x256xf32>
    %c2_71 = arith.constant 2 : index
    %c1_72 = arith.constant 1 : index
    %174 = memref.load %arg7[%c2_71, %c1_72] : memref<4x4xf32, #tpu.memory_space<smem>>
    %175 = vector.extract_strided_slice %127 {offsets = [1, 0], sizes = [1, 256], strides = [1, 1]} : vector<4x256xf32> to vector<1x256xf32>
    %176 = vector.broadcast %174 : f32 to vector<1x256xf32>
    %177 = arith.mulf %176, %175 : vector<1x256xf32>
    %178 = arith.addf %173, %177 : vector<1x256xf32>
    %c2_73 = arith.constant 2 : index
    %c2_74 = arith.constant 2 : index
    %179 = memref.load %arg7[%c2_73, %c2_74] : memref<4x4xf32, #tpu.memory_space<smem>>
    %180 = vector.extract_strided_slice %127 {offsets = [2, 0], sizes = [1, 256], strides = [1, 1]} : vector<4x256xf32> to vector<1x256xf32>
    %181 = vector.broadcast %179 : f32 to vector<1x256xf32>
    %182 = arith.mulf %181, %180 : vector<1x256xf32>
    %183 = arith.addf %178, %182 : vector<1x256xf32>
    %c2_75 = arith.constant 2 : index
    %c3_76 = arith.constant 3 : index
    %184 = memref.load %arg7[%c2_75, %c3_76] : memref<4x4xf32, #tpu.memory_space<smem>>
    %185 = vector.extract_strided_slice %127 {offsets = [3, 0], sizes = [1, 256], strides = [1, 1]} : vector<4x256xf32> to vector<1x256xf32>
    %186 = vector.broadcast %184 : f32 to vector<1x256xf32>
    %187 = arith.mulf %186, %185 : vector<1x256xf32>
    %188 = arith.addf %183, %187 : vector<1x256xf32>
    %189 = vector.extract_strided_slice %6 {offsets = [2, 0], sizes = [1, 256], strides = [1, 1]} : vector<4x256xf32> to vector<1x256xf32>
    %190 = arith.addf %188, %189 : vector<1x256xf32>
    %c3_77 = arith.constant 3 : index
    %c0_78 = arith.constant 0 : index
    %191 = memref.load %arg7[%c3_77, %c0_78] : memref<4x4xf32, #tpu.memory_space<smem>>
    %192 = vector.extract_strided_slice %127 {offsets = [0, 0], sizes = [1, 256], strides = [1, 1]} : vector<4x256xf32> to vector<1x256xf32>
    %193 = vector.broadcast %191 : f32 to vector<1x256xf32>
    %194 = arith.mulf %193, %192 : vector<1x256xf32>
    %c3_79 = arith.constant 3 : index
    %c1_80 = arith.constant 1 : index
    %195 = memref.load %arg7[%c3_79, %c1_80] : memref<4x4xf32, #tpu.memory_space<smem>>
    %196 = vector.extract_strided_slice %127 {offsets = [1, 0], sizes = [1, 256], strides = [1, 1]} : vector<4x256xf32> to vector<1x256xf32>
    %197 = vector.broadcast %195 : f32 to vector<1x256xf32>
    %198 = arith.mulf %197, %196 : vector<1x256xf32>
    %199 = arith.addf %194, %198 : vector<1x256xf32>
    %c3_81 = arith.constant 3 : index
    %c2_82 = arith.constant 2 : index
    %200 = memref.load %arg7[%c3_81, %c2_82] : memref<4x4xf32, #tpu.memory_space<smem>>
    %201 = vector.extract_strided_slice %127 {offsets = [2, 0], sizes = [1, 256], strides = [1, 1]} : vector<4x256xf32> to vector<1x256xf32>
    %202 = vector.broadcast %200 : f32 to vector<1x256xf32>
    %203 = arith.mulf %202, %201 : vector<1x256xf32>
    %204 = arith.addf %199, %203 : vector<1x256xf32>
    %c3_83 = arith.constant 3 : index
    %c3_84 = arith.constant 3 : index
    %205 = memref.load %arg7[%c3_83, %c3_84] : memref<4x4xf32, #tpu.memory_space<smem>>
    %206 = vector.extract_strided_slice %127 {offsets = [3, 0], sizes = [1, 256], strides = [1, 1]} : vector<4x256xf32> to vector<1x256xf32>
    %207 = vector.broadcast %205 : f32 to vector<1x256xf32>
    %208 = arith.mulf %207, %206 : vector<1x256xf32>
    %209 = arith.addf %204, %208 : vector<1x256xf32>
    %210 = vector.extract_strided_slice %6 {offsets = [3, 0], sizes = [1, 256], strides = [1, 1]} : vector<4x256xf32> to vector<1x256xf32>
    %211 = arith.addf %209, %210 : vector<1x256xf32>
    %212 = tpu.concatenate %148, %169, %190, %211 in 0 : vector<1x256xf32>, vector<1x256xf32>, vector<1x256xf32>, vector<1x256xf32> -> vector<4x256xf32>
    %213 = vector.extract_strided_slice %4 {offsets = [0, 0, 0], sizes = [1, 4, 256], strides = [1, 1, 1]} : vector<8x4x256xf32> to vector<1x4x256xf32>
    %214 = vector.shape_cast %213 : vector<1x4x256xf32> to vector<4x256xf32>
    %215 = vector.extract_strided_slice %214 {offsets = [0, 0], sizes = [1, 256], strides = [1, 1]} : vector<4x256xf32> to vector<1x256xf32>
    %216 = vector.extract_strided_slice %212 {offsets = [0, 0], sizes = [1, 256], strides = [1, 1]} : vector<4x256xf32> to vector<1x256xf32>
    %217 = arith.mulf %215, %216 : vector<1x256xf32>
    %218 = vector.extract_strided_slice %214 {offsets = [1, 0], sizes = [1, 256], strides = [1, 1]} : vector<4x256xf32> to vector<1x256xf32>
    %219 = vector.extract_strided_slice %212 {offsets = [1, 0], sizes = [1, 256], strides = [1, 1]} : vector<4x256xf32> to vector<1x256xf32>
    %220 = arith.mulf %218, %219 : vector<1x256xf32>
    %221 = arith.addf %217, %220 : vector<1x256xf32>
    %222 = vector.extract_strided_slice %214 {offsets = [2, 0], sizes = [1, 256], strides = [1, 1]} : vector<4x256xf32> to vector<1x256xf32>
    %223 = vector.extract_strided_slice %212 {offsets = [2, 0], sizes = [1, 256], strides = [1, 1]} : vector<4x256xf32> to vector<1x256xf32>
    %224 = arith.mulf %222, %223 : vector<1x256xf32>
    %225 = arith.addf %221, %224 : vector<1x256xf32>
    %226 = vector.extract_strided_slice %214 {offsets = [3, 0], sizes = [1, 256], strides = [1, 1]} : vector<4x256xf32> to vector<1x256xf32>
    %227 = vector.extract_strided_slice %212 {offsets = [3, 0], sizes = [1, 256], strides = [1, 1]} : vector<4x256xf32> to vector<1x256xf32>
    %228 = arith.mulf %226, %227 : vector<1x256xf32>
    %229 = arith.addf %225, %228 : vector<1x256xf32>
    %230 = vector.extract_strided_slice %4 {offsets = [1, 0, 0], sizes = [1, 4, 256], strides = [1, 1, 1]} : vector<8x4x256xf32> to vector<1x4x256xf32>
    %231 = vector.shape_cast %230 : vector<1x4x256xf32> to vector<4x256xf32>
    %232 = vector.extract_strided_slice %231 {offsets = [0, 0], sizes = [1, 256], strides = [1, 1]} : vector<4x256xf32> to vector<1x256xf32>
    %233 = vector.extract_strided_slice %212 {offsets = [0, 0], sizes = [1, 256], strides = [1, 1]} : vector<4x256xf32> to vector<1x256xf32>
    %234 = arith.mulf %232, %233 : vector<1x256xf32>
    %235 = vector.extract_strided_slice %231 {offsets = [1, 0], sizes = [1, 256], strides = [1, 1]} : vector<4x256xf32> to vector<1x256xf32>
    %236 = vector.extract_strided_slice %212 {offsets = [1, 0], sizes = [1, 256], strides = [1, 1]} : vector<4x256xf32> to vector<1x256xf32>
    %237 = arith.mulf %235, %236 : vector<1x256xf32>
    %238 = arith.addf %234, %237 : vector<1x256xf32>
    %239 = vector.extract_strided_slice %231 {offsets = [2, 0], sizes = [1, 256], strides = [1, 1]} : vector<4x256xf32> to vector<1x256xf32>
    %240 = vector.extract_strided_slice %212 {offsets = [2, 0], sizes = [1, 256], strides = [1, 1]} : vector<4x256xf32> to vector<1x256xf32>
    %241 = arith.mulf %239, %240 : vector<1x256xf32>
    %242 = arith.addf %238, %241 : vector<1x256xf32>
    %243 = vector.extract_strided_slice %231 {offsets = [3, 0], sizes = [1, 256], strides = [1, 1]} : vector<4x256xf32> to vector<1x256xf32>
    %244 = vector.extract_strided_slice %212 {offsets = [3, 0], sizes = [1, 256], strides = [1, 1]} : vector<4x256xf32> to vector<1x256xf32>
    %245 = arith.mulf %243, %244 : vector<1x256xf32>
    %246 = arith.addf %242, %245 : vector<1x256xf32>
    %247 = vector.extract_strided_slice %4 {offsets = [2, 0, 0], sizes = [1, 4, 256], strides = [1, 1, 1]} : vector<8x4x256xf32> to vector<1x4x256xf32>
    %248 = vector.shape_cast %247 : vector<1x4x256xf32> to vector<4x256xf32>
    %249 = vector.extract_strided_slice %248 {offsets = [0, 0], sizes = [1, 256], strides = [1, 1]} : vector<4x256xf32> to vector<1x256xf32>
    %250 = vector.extract_strided_slice %212 {offsets = [0, 0], sizes = [1, 256], strides = [1, 1]} : vector<4x256xf32> to vector<1x256xf32>
    %251 = arith.mulf %249, %250 : vector<1x256xf32>
    %252 = vector.extract_strided_slice %248 {offsets = [1, 0], sizes = [1, 256], strides = [1, 1]} : vector<4x256xf32> to vector<1x256xf32>
    %253 = vector.extract_strided_slice %212 {offsets = [1, 0], sizes = [1, 256], strides = [1, 1]} : vector<4x256xf32> to vector<1x256xf32>
    %254 = arith.mulf %252, %253 : vector<1x256xf32>
    %255 = arith.addf %251, %254 : vector<1x256xf32>
    %256 = vector.extract_strided_slice %248 {offsets = [2, 0], sizes = [1, 256], strides = [1, 1]} : vector<4x256xf32> to vector<1x256xf32>
    %257 = vector.extract_strided_slice %212 {offsets = [2, 0], sizes = [1, 256], strides = [1, 1]} : vector<4x256xf32> to vector<1x256xf32>
    %258 = arith.mulf %256, %257 : vector<1x256xf32>
    %259 = arith.addf %255, %258 : vector<1x256xf32>
    %260 = vector.extract_strided_slice %248 {offsets = [3, 0], sizes = [1, 256], strides = [1, 1]} : vector<4x256xf32> to vector<1x256xf32>
    %261 = vector.extract_strided_slice %212 {offsets = [3, 0], sizes = [1, 256], strides = [1, 1]} : vector<4x256xf32> to vector<1x256xf32>
    %262 = arith.mulf %260, %261 : vector<1x256xf32>
    %263 = arith.addf %259, %262 : vector<1x256xf32>
    %264 = vector.extract_strided_slice %4 {offsets = [3, 0, 0], sizes = [1, 4, 256], strides = [1, 1, 1]} : vector<8x4x256xf32> to vector<1x4x256xf32>
    %265 = vector.shape_cast %264 : vector<1x4x256xf32> to vector<4x256xf32>
    %266 = vector.extract_strided_slice %265 {offsets = [0, 0], sizes = [1, 256], strides = [1, 1]} : vector<4x256xf32> to vector<1x256xf32>
    %267 = vector.extract_strided_slice %212 {offsets = [0, 0], sizes = [1, 256], strides = [1, 1]} : vector<4x256xf32> to vector<1x256xf32>
    %268 = arith.mulf %266, %267 : vector<1x256xf32>
    %269 = vector.extract_strided_slice %265 {offsets = [1, 0], sizes = [1, 256], strides = [1, 1]} : vector<4x256xf32> to vector<1x256xf32>
    %270 = vector.extract_strided_slice %212 {offsets = [1, 0], sizes = [1, 256], strides = [1, 1]} : vector<4x256xf32> to vector<1x256xf32>
    %271 = arith.mulf %269, %270 : vector<1x256xf32>
    %272 = arith.addf %268, %271 : vector<1x256xf32>
    %273 = vector.extract_strided_slice %265 {offsets = [2, 0], sizes = [1, 256], strides = [1, 1]} : vector<4x256xf32> to vector<1x256xf32>
    %274 = vector.extract_strided_slice %212 {offsets = [2, 0], sizes = [1, 256], strides = [1, 1]} : vector<4x256xf32> to vector<1x256xf32>
    %275 = arith.mulf %273, %274 : vector<1x256xf32>
    %276 = arith.addf %272, %275 : vector<1x256xf32>
    %277 = vector.extract_strided_slice %265 {offsets = [3, 0], sizes = [1, 256], strides = [1, 1]} : vector<4x256xf32> to vector<1x256xf32>
    %278 = vector.extract_strided_slice %212 {offsets = [3, 0], sizes = [1, 256], strides = [1, 1]} : vector<4x256xf32> to vector<1x256xf32>
    %279 = arith.mulf %277, %278 : vector<1x256xf32>
    %280 = arith.addf %276, %279 : vector<1x256xf32>
    %281 = vector.extract_strided_slice %4 {offsets = [4, 0, 0], sizes = [1, 4, 256], strides = [1, 1, 1]} : vector<8x4x256xf32> to vector<1x4x256xf32>
    %282 = vector.shape_cast %281 : vector<1x4x256xf32> to vector<4x256xf32>
    %283 = vector.extract_strided_slice %282 {offsets = [0, 0], sizes = [1, 256], strides = [1, 1]} : vector<4x256xf32> to vector<1x256xf32>
    %284 = vector.extract_strided_slice %212 {offsets = [0, 0], sizes = [1, 256], strides = [1, 1]} : vector<4x256xf32> to vector<1x256xf32>
    %285 = arith.mulf %283, %284 : vector<1x256xf32>
    %286 = vector.extract_strided_slice %282 {offsets = [1, 0], sizes = [1, 256], strides = [1, 1]} : vector<4x256xf32> to vector<1x256xf32>
    %287 = vector.extract_strided_slice %212 {offsets = [1, 0], sizes = [1, 256], strides = [1, 1]} : vector<4x256xf32> to vector<1x256xf32>
    %288 = arith.mulf %286, %287 : vector<1x256xf32>
    %289 = arith.addf %285, %288 : vector<1x256xf32>
    %290 = vector.extract_strided_slice %282 {offsets = [2, 0], sizes = [1, 256], strides = [1, 1]} : vector<4x256xf32> to vector<1x256xf32>
    %291 = vector.extract_strided_slice %212 {offsets = [2, 0], sizes = [1, 256], strides = [1, 1]} : vector<4x256xf32> to vector<1x256xf32>
    %292 = arith.mulf %290, %291 : vector<1x256xf32>
    %293 = arith.addf %289, %292 : vector<1x256xf32>
    %294 = vector.extract_strided_slice %282 {offsets = [3, 0], sizes = [1, 256], strides = [1, 1]} : vector<4x256xf32> to vector<1x256xf32>
    %295 = vector.extract_strided_slice %212 {offsets = [3, 0], sizes = [1, 256], strides = [1, 1]} : vector<4x256xf32> to vector<1x256xf32>
    %296 = arith.mulf %294, %295 : vector<1x256xf32>
    %297 = arith.addf %293, %296 : vector<1x256xf32>
    %298 = vector.extract_strided_slice %4 {offsets = [5, 0, 0], sizes = [1, 4, 256], strides = [1, 1, 1]} : vector<8x4x256xf32> to vector<1x4x256xf32>
    %299 = vector.shape_cast %298 : vector<1x4x256xf32> to vector<4x256xf32>
    %300 = vector.extract_strided_slice %299 {offsets = [0, 0], sizes = [1, 256], strides = [1, 1]} : vector<4x256xf32> to vector<1x256xf32>
    %301 = vector.extract_strided_slice %212 {offsets = [0, 0], sizes = [1, 256], strides = [1, 1]} : vector<4x256xf32> to vector<1x256xf32>
    %302 = arith.mulf %300, %301 : vector<1x256xf32>
    %303 = vector.extract_strided_slice %299 {offsets = [1, 0], sizes = [1, 256], strides = [1, 1]} : vector<4x256xf32> to vector<1x256xf32>
    %304 = vector.extract_strided_slice %212 {offsets = [1, 0], sizes = [1, 256], strides = [1, 1]} : vector<4x256xf32> to vector<1x256xf32>
    %305 = arith.mulf %303, %304 : vector<1x256xf32>
    %306 = arith.addf %302, %305 : vector<1x256xf32>
    %307 = vector.extract_strided_slice %299 {offsets = [2, 0], sizes = [1, 256], strides = [1, 1]} : vector<4x256xf32> to vector<1x256xf32>
    %308 = vector.extract_strided_slice %212 {offsets = [2, 0], sizes = [1, 256], strides = [1, 1]} : vector<4x256xf32> to vector<1x256xf32>
    %309 = arith.mulf %307, %308 : vector<1x256xf32>
    %310 = arith.addf %306, %309 : vector<1x256xf32>
    %311 = vector.extract_strided_slice %299 {offsets = [3, 0], sizes = [1, 256], strides = [1, 1]} : vector<4x256xf32> to vector<1x256xf32>
    %312 = vector.extract_strided_slice %212 {offsets = [3, 0], sizes = [1, 256], strides = [1, 1]} : vector<4x256xf32> to vector<1x256xf32>
    %313 = arith.mulf %311, %312 : vector<1x256xf32>
    %314 = arith.addf %310, %313 : vector<1x256xf32>
    %315 = vector.extract_strided_slice %4 {offsets = [6, 0, 0], sizes = [1, 4, 256], strides = [1, 1, 1]} : vector<8x4x256xf32> to vector<1x4x256xf32>
    %316 = vector.shape_cast %315 : vector<1x4x256xf32> to vector<4x256xf32>
    %317 = vector.extract_strided_slice %316 {offsets = [0, 0], sizes = [1, 256], strides = [1, 1]} : vector<4x256xf32> to vector<1x256xf32>
    %318 = vector.extract_strided_slice %212 {offsets = [0, 0], sizes = [1, 256], strides = [1, 1]} : vector<4x256xf32> to vector<1x256xf32>
    %319 = arith.mulf %317, %318 : vector<1x256xf32>
    %320 = vector.extract_strided_slice %316 {offsets = [1, 0], sizes = [1, 256], strides = [1, 1]} : vector<4x256xf32> to vector<1x256xf32>
    %321 = vector.extract_strided_slice %212 {offsets = [1, 0], sizes = [1, 256], strides = [1, 1]} : vector<4x256xf32> to vector<1x256xf32>
    %322 = arith.mulf %320, %321 : vector<1x256xf32>
    %323 = arith.addf %319, %322 : vector<1x256xf32>
    %324 = vector.extract_strided_slice %316 {offsets = [2, 0], sizes = [1, 256], strides = [1, 1]} : vector<4x256xf32> to vector<1x256xf32>
    %325 = vector.extract_strided_slice %212 {offsets = [2, 0], sizes = [1, 256], strides = [1, 1]} : vector<4x256xf32> to vector<1x256xf32>
    %326 = arith.mulf %324, %325 : vector<1x256xf32>
    %327 = arith.addf %323, %326 : vector<1x256xf32>
    %328 = vector.extract_strided_slice %316 {offsets = [3, 0], sizes = [1, 256], strides = [1, 1]} : vector<4x256xf32> to vector<1x256xf32>
    %329 = vector.extract_strided_slice %212 {offsets = [3, 0], sizes = [1, 256], strides = [1, 1]} : vector<4x256xf32> to vector<1x256xf32>
    %330 = arith.mulf %328, %329 : vector<1x256xf32>
    %331 = arith.addf %327, %330 : vector<1x256xf32>
    %332 = vector.extract_strided_slice %4 {offsets = [7, 0, 0], sizes = [1, 4, 256], strides = [1, 1, 1]} : vector<8x4x256xf32> to vector<1x4x256xf32>
    %333 = vector.shape_cast %332 : vector<1x4x256xf32> to vector<4x256xf32>
    %334 = vector.extract_strided_slice %333 {offsets = [0, 0], sizes = [1, 256], strides = [1, 1]} : vector<4x256xf32> to vector<1x256xf32>
    %335 = vector.extract_strided_slice %212 {offsets = [0, 0], sizes = [1, 256], strides = [1, 1]} : vector<4x256xf32> to vector<1x256xf32>
    %336 = arith.mulf %334, %335 : vector<1x256xf32>
    %337 = vector.extract_strided_slice %333 {offsets = [1, 0], sizes = [1, 256], strides = [1, 1]} : vector<4x256xf32> to vector<1x256xf32>
    %338 = vector.extract_strided_slice %212 {offsets = [1, 0], sizes = [1, 256], strides = [1, 1]} : vector<4x256xf32> to vector<1x256xf32>
    %339 = arith.mulf %337, %338 : vector<1x256xf32>
    %340 = arith.addf %336, %339 : vector<1x256xf32>
    %341 = vector.extract_strided_slice %333 {offsets = [2, 0], sizes = [1, 256], strides = [1, 1]} : vector<4x256xf32> to vector<1x256xf32>
    %342 = vector.extract_strided_slice %212 {offsets = [2, 0], sizes = [1, 256], strides = [1, 1]} : vector<4x256xf32> to vector<1x256xf32>
    %343 = arith.mulf %341, %342 : vector<1x256xf32>
    %344 = arith.addf %340, %343 : vector<1x256xf32>
    %345 = vector.extract_strided_slice %333 {offsets = [3, 0], sizes = [1, 256], strides = [1, 1]} : vector<4x256xf32> to vector<1x256xf32>
    %346 = vector.extract_strided_slice %212 {offsets = [3, 0], sizes = [1, 256], strides = [1, 1]} : vector<4x256xf32> to vector<1x256xf32>
    %347 = arith.mulf %345, %346 : vector<1x256xf32>
    %348 = arith.addf %344, %347 : vector<1x256xf32>
    %349 = tpu.concatenate %229, %246, %263, %280, %297, %314, %331, %348 in 0 : vector<1x256xf32>, vector<1x256xf32>, vector<1x256xf32>, vector<1x256xf32>, vector<1x256xf32>, vector<1x256xf32>, vector<1x256xf32>, vector<1x256xf32> -> vector<8x256xf32>
    %c0_85 = arith.constant 0 : index
    %c0_86 = arith.constant 0 : index
    %c0_87 = arith.constant 0 : index
    %350 = vector.load %arg8[%c0_85, %c0_86, %c0_87] : memref<2x8x256xf32, #tpu.memory_space<vmem>>, vector<1x8x256xf32>
    %351 = vector.shape_cast %350 : vector<1x8x256xf32> to vector<8x256xf32>
    %352 = vector.shape_cast %349 : vector<8x256xf32> to vector<1x8x256xf32>
    tpu.vector_store %arg8[%c0_85, %c0_86, %c0_87], %352 {strides = array<i32>} : memref<2x8x256xf32, #tpu.memory_space<vmem>>, vector<1x8x256xf32>,
    %c1_88 = arith.constant 1 : index
    %c0_89 = arith.constant 0 : index
    %c0_90 = arith.constant 0 : index
    %353 = vector.load %arg0[%c1_88, %c0_89, %c0_90] : memref<2x4x256xf32, #tpu.memory_space<vmem>>, vector<1x4x256xf32>
    %354 = vector.shape_cast %353 : vector<1x4x256xf32> to vector<4x256xf32>
    %355 = vector.shape_cast %354 : vector<4x256xf32> to vector<1x4x256xf32>
    %cst_91 = arith.constant dense<0.000000e+00> : vector<1xf32>
    %356 = vector.multi_reduction <add>, %355, %cst_91 [1, 2] : vector<1x4x256xf32> to vector<1xf32>
    %357 = vector.shape_cast %356 : vector<1xf32> to vector<1x1x1xf32>
    %358 = vector.extract %357[0, 0, 0] : f32 from vector<1x1x1xf32>
    %359 = arith.mulf %354, %354 : vector<4x256xf32>
    %360 = vector.shape_cast %359 : vector<4x256xf32> to vector<1x4x256xf32>
    %cst_92 = arith.constant dense<0.000000e+00> : vector<1xf32>
    %361 = vector.multi_reduction <add>, %360, %cst_92 [1, 2] : vector<1x4x256xf32> to vector<1xf32>
    %362 = vector.shape_cast %361 : vector<1xf32> to vector<1x1x1xf32>
    %363 = vector.extract %362[0, 0, 0] : f32 from vector<1x1x1xf32>
    %cst_93 = arith.constant 9.765625E-4 : f32
    %364 = arith.mulf %358, %cst_93 : f32
    %cst_94 = arith.constant 9.765625E-4 : f32
    %365 = arith.mulf %363, %cst_94 : f32
    %366 = arith.mulf %364, %364 : f32
    %367 = arith.subf %365, %366 : f32
    %cst_95 = arith.constant 0.000000e+00 : f32
    %368 = arith.maximumf %367, %cst_95 : f32
    %369 = vector.broadcast %364 : f32 to vector<4x256xf32>
    %370 = arith.subf %354, %369 : vector<4x256xf32>
    %cst_96 = arith.constant 9.99999974E-6 : f32
    %371 = arith.addf %368, %cst_96 : f32
    %372 = math.rsqrt %371 : f32
    %373 = vector.broadcast %372 : f32 to vector<4x256xf32>
    %374 = arith.mulf %373, %0 : vector<4x256xf32>
    %375 = arith.mulf %370, %374 : vector<4x256xf32>
    %376 = arith.addf %375, %1 : vector<4x256xf32>
    %c0_97 = arith.constant 0 : index
    %c0_98 = arith.constant 0 : index
    %377 = memref.load %arg6[%c0_97, %c0_98] : memref<4x4xf32, #tpu.memory_space<smem>>
    %378 = vector.extract_strided_slice %376 {offsets = [0, 0], sizes = [1, 256], strides = [1, 1]} : vector<4x256xf32> to vector<1x256xf32>
    %379 = vector.broadcast %377 : f32 to vector<1x256xf32>
    %380 = arith.mulf %379, %378 : vector<1x256xf32>
    %c0_99 = arith.constant 0 : index
    %c1_100 = arith.constant 1 : index
    %381 = memref.load %arg6[%c0_99, %c1_100] : memref<4x4xf32, #tpu.memory_space<smem>>
    %382 = vector.extract_strided_slice %376 {offsets = [1, 0], sizes = [1, 256], strides = [1, 1]} : vector<4x256xf32> to vector<1x256xf32>
    %383 = vector.broadcast %381 : f32 to vector<1x256xf32>
    %384 = arith.mulf %383, %382 : vector<1x256xf32>
    %385 = arith.addf %380, %384 : vector<1x256xf32>
    %c0_101 = arith.constant 0 : index
    %c2_102 = arith.constant 2 : index
    %386 = memref.load %arg6[%c0_101, %c2_102] : memref<4x4xf32, #tpu.memory_space<smem>>
    %387 = vector.extract_strided_slice %376 {offsets = [2, 0], sizes = [1, 256], strides = [1, 1]} : vector<4x256xf32> to vector<1x256xf32>
    %388 = vector.broadcast %386 : f32 to vector<1x256xf32>
    %389 = arith.mulf %388, %387 : vector<1x256xf32>
    %390 = arith.addf %385, %389 : vector<1x256xf32>
    %c0_103 = arith.constant 0 : index
    %c3_104 = arith.constant 3 : index
    %391 = memref.load %arg6[%c0_103, %c3_104] : memref<4x4xf32, #tpu.memory_space<smem>>
    %392 = vector.extract_strided_slice %376 {offsets = [3, 0], sizes = [1, 256], strides = [1, 1]} : vector<4x256xf32> to vector<1x256xf32>
    %393 = vector.broadcast %391 : f32 to vector<1x256xf32>
    %394 = arith.mulf %393, %392 : vector<1x256xf32>
    %395 = arith.addf %390, %394 : vector<1x256xf32>
    %c1_105 = arith.constant 1 : index
    %c0_106 = arith.constant 0 : index
    %396 = memref.load %arg6[%c1_105, %c0_106] : memref<4x4xf32, #tpu.memory_space<smem>>
    %397 = vector.extract_strided_slice %376 {offsets = [0, 0], sizes = [1, 256], strides = [1, 1]} : vector<4x256xf32> to vector<1x256xf32>
    %398 = vector.broadcast %396 : f32 to vector<1x256xf32>
    %399 = arith.mulf %398, %397 : vector<1x256xf32>
    %c1_107 = arith.constant 1 : index
    %c1_108 = arith.constant 1 : index
    %400 = memref.load %arg6[%c1_107, %c1_108] : memref<4x4xf32, #tpu.memory_space<smem>>
    %401 = vector.extract_strided_slice %376 {offsets = [1, 0], sizes = [1, 256], strides = [1, 1]} : vector<4x256xf32> to vector<1x256xf32>
    %402 = vector.broadcast %400 : f32 to vector<1x256xf32>
    %403 = arith.mulf %402, %401 : vector<1x256xf32>
    %404 = arith.addf %399, %403 : vector<1x256xf32>
    %c1_109 = arith.constant 1 : index
    %c2_110 = arith.constant 2 : index
    %405 = memref.load %arg6[%c1_109, %c2_110] : memref<4x4xf32, #tpu.memory_space<smem>>
    %406 = vector.extract_strided_slice %376 {offsets = [2, 0], sizes = [1, 256], strides = [1, 1]} : vector<4x256xf32> to vector<1x256xf32>
    %407 = vector.broadcast %405 : f32 to vector<1x256xf32>
    %408 = arith.mulf %407, %406 : vector<1x256xf32>
    %409 = arith.addf %404, %408 : vector<1x256xf32>
    %c1_111 = arith.constant 1 : index
    %c3_112 = arith.constant 3 : index
    %410 = memref.load %arg6[%c1_111, %c3_112] : memref<4x4xf32, #tpu.memory_space<smem>>
    %411 = vector.extract_strided_slice %376 {offsets = [3, 0], sizes = [1, 256], strides = [1, 1]} : vector<4x256xf32> to vector<1x256xf32>
    %412 = vector.broadcast %410 : f32 to vector<1x256xf32>
    %413 = arith.mulf %412, %411 : vector<1x256xf32>
    %414 = arith.addf %409, %413 : vector<1x256xf32>
    %c2_113 = arith.constant 2 : index
    %c0_114 = arith.constant 0 : index
    %415 = memref.load %arg6[%c2_113, %c0_114] : memref<4x4xf32, #tpu.memory_space<smem>>
    %416 = vector.extract_strided_slice %376 {offsets = [0, 0], sizes = [1, 256], strides = [1, 1]} : vector<4x256xf32> to vector<1x256xf32>
    %417 = vector.broadcast %415 : f32 to vector<1x256xf32>
    %418 = arith.mulf %417, %416 : vector<1x256xf32>
    %c2_115 = arith.constant 2 : index
    %c1_116 = arith.constant 1 : index
    %419 = memref.load %arg6[%c2_115, %c1_116] : memref<4x4xf32, #tpu.memory_space<smem>>
    %420 = vector.extract_strided_slice %376 {offsets = [1, 0], sizes = [1, 256], strides = [1, 1]} : vector<4x256xf32> to vector<1x256xf32>
    %421 = vector.broadcast %419 : f32 to vector<1x256xf32>
    %422 = arith.mulf %421, %420 : vector<1x256xf32>
    %423 = arith.addf %418, %422 : vector<1x256xf32>
    %c2_117 = arith.constant 2 : index
    %c2_118 = arith.constant 2 : index
    %424 = memref.load %arg6[%c2_117, %c2_118] : memref<4x4xf32, #tpu.memory_space<smem>>
    %425 = vector.extract_strided_slice %376 {offsets = [2, 0], sizes = [1, 256], strides = [1, 1]} : vector<4x256xf32> to vector<1x256xf32>
    %426 = vector.broadcast %424 : f32 to vector<1x256xf32>
    %427 = arith.mulf %426, %425 : vector<1x256xf32>
    %428 = arith.addf %423, %427 : vector<1x256xf32>
    %c2_119 = arith.constant 2 : index
    %c3_120 = arith.constant 3 : index
    %429 = memref.load %arg6[%c2_119, %c3_120] : memref<4x4xf32, #tpu.memory_space<smem>>
    %430 = vector.extract_strided_slice %376 {offsets = [3, 0], sizes = [1, 256], strides = [1, 1]} : vector<4x256xf32> to vector<1x256xf32>
    %431 = vector.broadcast %429 : f32 to vector<1x256xf32>
    %432 = arith.mulf %431, %430 : vector<1x256xf32>
    %433 = arith.addf %428, %432 : vector<1x256xf32>
    %c3_121 = arith.constant 3 : index
    %c0_122 = arith.constant 0 : index
    %434 = memref.load %arg6[%c3_121, %c0_122] : memref<4x4xf32, #tpu.memory_space<smem>>
    %435 = vector.extract_strided_slice %376 {offsets = [0, 0], sizes = [1, 256], strides = [1, 1]} : vector<4x256xf32> to vector<1x256xf32>
    %436 = vector.broadcast %434 : f32 to vector<1x256xf32>
    %437 = arith.mulf %436, %435 : vector<1x256xf32>
    %c3_123 = arith.constant 3 : index
    %c1_124 = arith.constant 1 : index
    %438 = memref.load %arg6[%c3_123, %c1_124] : memref<4x4xf32, #tpu.memory_space<smem>>
    %439 = vector.extract_strided_slice %376 {offsets = [1, 0], sizes = [1, 256], strides = [1, 1]} : vector<4x256xf32> to vector<1x256xf32>
    %440 = vector.broadcast %438 : f32 to vector<1x256xf32>
    %441 = arith.mulf %440, %439 : vector<1x256xf32>
    %442 = arith.addf %437, %441 : vector<1x256xf32>
    %c3_125 = arith.constant 3 : index
    %c2_126 = arith.constant 2 : index
    %443 = memref.load %arg6[%c3_125, %c2_126] : memref<4x4xf32, #tpu.memory_space<smem>>
    %444 = vector.extract_strided_slice %376 {offsets = [2, 0], sizes = [1, 256], strides = [1, 1]} : vector<4x256xf32> to vector<1x256xf32>
    %445 = vector.broadcast %443 : f32 to vector<1x256xf32>
    %446 = arith.mulf %445, %444 : vector<1x256xf32>
    %447 = arith.addf %442, %446 : vector<1x256xf32>
    %c3_127 = arith.constant 3 : index
    %c3_128 = arith.constant 3 : index
    %448 = memref.load %arg6[%c3_127, %c3_128] : memref<4x4xf32, #tpu.memory_space<smem>>
    %449 = vector.extract_strided_slice %376 {offsets = [3, 0], sizes = [1, 256], strides = [1, 1]} : vector<4x256xf32> to vector<1x256xf32>
    %450 = vector.broadcast %448 : f32 to vector<1x256xf32>
    %451 = arith.mulf %450, %449 : vector<1x256xf32>
    %452 = arith.addf %447, %451 : vector<1x256xf32>
    %453 = tpu.concatenate %395, %414, %433, %452 in 0 : vector<1x256xf32>, vector<1x256xf32>, vector<1x256xf32>, vector<1x256xf32> -> vector<4x256xf32>
    %454 = vector.shape_cast %453 : vector<4x256xf32> to vector<1x4x256xf32>
    %cst_129 = arith.constant dense<0.000000e+00> : vector<1xf32>
    %455 = vector.multi_reduction <add>, %454, %cst_129 [1, 2] : vector<1x4x256xf32> to vector<1xf32>
    %456 = vector.shape_cast %455 : vector<1xf32> to vector<1x1x1xf32>
    %457 = vector.extract %456[0, 0, 0] : f32 from vector<1x1x1xf32>
    %458 = arith.mulf %453, %453 : vector<4x256xf32>
    %459 = vector.shape_cast %458 : vector<4x256xf32> to vector<1x4x256xf32>
    %cst_130 = arith.constant dense<0.000000e+00> : vector<1xf32>
    %460 = vector.multi_reduction <add>, %459, %cst_130 [1, 2] : vector<1x4x256xf32> to vector<1xf32>
    %461 = vector.shape_cast %460 : vector<1xf32> to vector<1x1x1xf32>
    %462 = vector.extract %461[0, 0, 0] : f32 from vector<1x1x1xf32>
    %cst_131 = arith.constant 9.765625E-4 : f32
    %463 = arith.mulf %457, %cst_131 : f32
    %cst_132 = arith.constant 9.765625E-4 : f32
    %464 = arith.mulf %462, %cst_132 : f32
    %465 = arith.mulf %463, %463 : f32
    %466 = arith.subf %464, %465 : f32
    %cst_133 = arith.constant 0.000000e+00 : f32
    %467 = arith.maximumf %466, %cst_133 : f32
    %468 = vector.broadcast %463 : f32 to vector<4x256xf32>
    %469 = arith.subf %453, %468 : vector<4x256xf32>
    %cst_134 = arith.constant 9.99999974E-6 : f32
    %470 = arith.addf %467, %cst_134 : f32
    %471 = math.rsqrt %470 : f32
    %472 = vector.broadcast %471 : f32 to vector<4x256xf32>
    %473 = arith.mulf %472, %2 : vector<4x256xf32>
    %474 = arith.mulf %469, %473 : vector<4x256xf32>
    %475 = arith.addf %474, %3 : vector<4x256xf32>
    %c0_135 = arith.constant 0 : index
    %c0_136 = arith.constant 0 : index
    %476 = memref.load %arg7[%c0_135, %c0_136] : memref<4x4xf32, #tpu.memory_space<smem>>
    %477 = vector.extract_strided_slice %475 {offsets = [0, 0], sizes = [1, 256], strides = [1, 1]} : vector<4x256xf32> to vector<1x256xf32>
    %478 = vector.broadcast %476 : f32 to vector<1x256xf32>
    %479 = arith.mulf %478, %477 : vector<1x256xf32>
    %c0_137 = arith.constant 0 : index
    %c1_138 = arith.constant 1 : index
    %480 = memref.load %arg7[%c0_137, %c1_138] : memref<4x4xf32, #tpu.memory_space<smem>>
    %481 = vector.extract_strided_slice %475 {offsets = [1, 0], sizes = [1, 256], strides = [1, 1]} : vector<4x256xf32> to vector<1x256xf32>
    %482 = vector.broadcast %480 : f32 to vector<1x256xf32>
    %483 = arith.mulf %482, %481 : vector<1x256xf32>
    %484 = arith.addf %479, %483 : vector<1x256xf32>
    %c0_139 = arith.constant 0 : index
    %c2_140 = arith.constant 2 : index
    %485 = memref.load %arg7[%c0_139, %c2_140] : memref<4x4xf32, #tpu.memory_space<smem>>
    %486 = vector.extract_strided_slice %475 {offsets = [2, 0], sizes = [1, 256], strides = [1, 1]} : vector<4x256xf32> to vector<1x256xf32>
    %487 = vector.broadcast %485 : f32 to vector<1x256xf32>
    %488 = arith.mulf %487, %486 : vector<1x256xf32>
    %489 = arith.addf %484, %488 : vector<1x256xf32>
    %c0_141 = arith.constant 0 : index
    %c3_142 = arith.constant 3 : index
    %490 = memref.load %arg7[%c0_141, %c3_142] : memref<4x4xf32, #tpu.memory_space<smem>>
    %491 = vector.extract_strided_slice %475 {offsets = [3, 0], sizes = [1, 256], strides = [1, 1]} : vector<4x256xf32> to vector<1x256xf32>
    %492 = vector.broadcast %490 : f32 to vector<1x256xf32>
    %493 = arith.mulf %492, %491 : vector<1x256xf32>
    %494 = arith.addf %489, %493 : vector<1x256xf32>
    %495 = vector.extract_strided_slice %354 {offsets = [0, 0], sizes = [1, 256], strides = [1, 1]} : vector<4x256xf32> to vector<1x256xf32>
    %496 = arith.addf %494, %495 : vector<1x256xf32>
    %c1_143 = arith.constant 1 : index
    %c0_144 = arith.constant 0 : index
    %497 = memref.load %arg7[%c1_143, %c0_144] : memref<4x4xf32, #tpu.memory_space<smem>>
    %498 = vector.extract_strided_slice %475 {offsets = [0, 0], sizes = [1, 256], strides = [1, 1]} : vector<4x256xf32> to vector<1x256xf32>
    %499 = vector.broadcast %497 : f32 to vector<1x256xf32>
    %500 = arith.mulf %499, %498 : vector<1x256xf32>
    %c1_145 = arith.constant 1 : index
    %c1_146 = arith.constant 1 : index
    %501 = memref.load %arg7[%c1_145, %c1_146] : memref<4x4xf32, #tpu.memory_space<smem>>
    %502 = vector.extract_strided_slice %475 {offsets = [1, 0], sizes = [1, 256], strides = [1, 1]} : vector<4x256xf32> to vector<1x256xf32>
    %503 = vector.broadcast %501 : f32 to vector<1x256xf32>
    %504 = arith.mulf %503, %502 : vector<1x256xf32>
    %505 = arith.addf %500, %504 : vector<1x256xf32>
    %c1_147 = arith.constant 1 : index
    %c2_148 = arith.constant 2 : index
    %506 = memref.load %arg7[%c1_147, %c2_148] : memref<4x4xf32, #tpu.memory_space<smem>>
    %507 = vector.extract_strided_slice %475 {offsets = [2, 0], sizes = [1, 256], strides = [1, 1]} : vector<4x256xf32> to vector<1x256xf32>
    %508 = vector.broadcast %506 : f32 to vector<1x256xf32>
    %509 = arith.mulf %508, %507 : vector<1x256xf32>
    %510 = arith.addf %505, %509 : vector<1x256xf32>
    %c1_149 = arith.constant 1 : index
    %c3_150 = arith.constant 3 : index
    %511 = memref.load %arg7[%c1_149, %c3_150] : memref<4x4xf32, #tpu.memory_space<smem>>
    %512 = vector.extract_strided_slice %475 {offsets = [3, 0], sizes = [1, 256], strides = [1, 1]} : vector<4x256xf32> to vector<1x256xf32>
    %513 = vector.broadcast %511 : f32 to vector<1x256xf32>
    %514 = arith.mulf %513, %512 : vector<1x256xf32>
    %515 = arith.addf %510, %514 : vector<1x256xf32>
    %516 = vector.extract_strided_slice %354 {offsets = [1, 0], sizes = [1, 256], strides = [1, 1]} : vector<4x256xf32> to vector<1x256xf32>
    %517 = arith.addf %515, %516 : vector<1x256xf32>
    %c2_151 = arith.constant 2 : index
    %c0_152 = arith.constant 0 : index
    %518 = memref.load %arg7[%c2_151, %c0_152] : memref<4x4xf32, #tpu.memory_space<smem>>
    %519 = vector.extract_strided_slice %475 {offsets = [0, 0], sizes = [1, 256], strides = [1, 1]} : vector<4x256xf32> to vector<1x256xf32>
    %520 = vector.broadcast %518 : f32 to vector<1x256xf32>
    %521 = arith.mulf %520, %519 : vector<1x256xf32>
    %c2_153 = arith.constant 2 : index
    %c1_154 = arith.constant 1 : index
    %522 = memref.load %arg7[%c2_153, %c1_154] : memref<4x4xf32, #tpu.memory_space<smem>>
    %523 = vector.extract_strided_slice %475 {offsets = [1, 0], sizes = [1, 256], strides = [1, 1]} : vector<4x256xf32> to vector<1x256xf32>
    %524 = vector.broadcast %522 : f32 to vector<1x256xf32>
    %525 = arith.mulf %524, %523 : vector<1x256xf32>
    %526 = arith.addf %521, %525 : vector<1x256xf32>
    %c2_155 = arith.constant 2 : index
    %c2_156 = arith.constant 2 : index
    %527 = memref.load %arg7[%c2_155, %c2_156] : memref<4x4xf32, #tpu.memory_space<smem>>
    %528 = vector.extract_strided_slice %475 {offsets = [2, 0], sizes = [1, 256], strides = [1, 1]} : vector<4x256xf32> to vector<1x256xf32>
    %529 = vector.broadcast %527 : f32 to vector<1x256xf32>
    %530 = arith.mulf %529, %528 : vector<1x256xf32>
    %531 = arith.addf %526, %530 : vector<1x256xf32>
    %c2_157 = arith.constant 2 : index
    %c3_158 = arith.constant 3 : index
    %532 = memref.load %arg7[%c2_157, %c3_158] : memref<4x4xf32, #tpu.memory_space<smem>>
    %533 = vector.extract_strided_slice %475 {offsets = [3, 0], sizes = [1, 256], strides = [1, 1]} : vector<4x256xf32> to vector<1x256xf32>
    %534 = vector.broadcast %532 : f32 to vector<1x256xf32>
    %535 = arith.mulf %534, %533 : vector<1x256xf32>
    %536 = arith.addf %531, %535 : vector<1x256xf32>
    %537 = vector.extract_strided_slice %354 {offsets = [2, 0], sizes = [1, 256], strides = [1, 1]} : vector<4x256xf32> to vector<1x256xf32>
    %538 = arith.addf %536, %537 : vector<1x256xf32>
    %c3_159 = arith.constant 3 : index
    %c0_160 = arith.constant 0 : index
    %539 = memref.load %arg7[%c3_159, %c0_160] : memref<4x4xf32, #tpu.memory_space<smem>>
    %540 = vector.extract_strided_slice %475 {offsets = [0, 0], sizes = [1, 256], strides = [1, 1]} : vector<4x256xf32> to vector<1x256xf32>
    %541 = vector.broadcast %539 : f32 to vector<1x256xf32>
    %542 = arith.mulf %541, %540 : vector<1x256xf32>
    %c3_161 = arith.constant 3 : index
    %c1_162 = arith.constant 1 : index
    %543 = memref.load %arg7[%c3_161, %c1_162] : memref<4x4xf32, #tpu.memory_space<smem>>
    %544 = vector.extract_strided_slice %475 {offsets = [1, 0], sizes = [1, 256], strides = [1, 1]} : vector<4x256xf32> to vector<1x256xf32>
    %545 = vector.broadcast %543 : f32 to vector<1x256xf32>
    %546 = arith.mulf %545, %544 : vector<1x256xf32>
    %547 = arith.addf %542, %546 : vector<1x256xf32>
    %c3_163 = arith.constant 3 : index
    %c2_164 = arith.constant 2 : index
    %548 = memref.load %arg7[%c3_163, %c2_164] : memref<4x4xf32, #tpu.memory_space<smem>>
    %549 = vector.extract_strided_slice %475 {offsets = [2, 0], sizes = [1, 256], strides = [1, 1]} : vector<4x256xf32> to vector<1x256xf32>
    %550 = vector.broadcast %548 : f32 to vector<1x256xf32>
    %551 = arith.mulf %550, %549 : vector<1x256xf32>
    %552 = arith.addf %547, %551 : vector<1x256xf32>
    %c3_165 = arith.constant 3 : index
    %c3_166 = arith.constant 3 : index
    %553 = memref.load %arg7[%c3_165, %c3_166] : memref<4x4xf32, #tpu.memory_space<smem>>
    %554 = vector.extract_strided_slice %475 {offsets = [3, 0], sizes = [1, 256], strides = [1, 1]} : vector<4x256xf32> to vector<1x256xf32>
    %555 = vector.broadcast %553 : f32 to vector<1x256xf32>
    %556 = arith.mulf %555, %554 : vector<1x256xf32>
    %557 = arith.addf %552, %556 : vector<1x256xf32>
    %558 = vector.extract_strided_slice %354 {offsets = [3, 0], sizes = [1, 256], strides = [1, 1]} : vector<4x256xf32> to vector<1x256xf32>
    %559 = arith.addf %557, %558 : vector<1x256xf32>
    %560 = tpu.concatenate %496, %517, %538, %559 in 0 : vector<1x256xf32>, vector<1x256xf32>, vector<1x256xf32>, vector<1x256xf32> -> vector<4x256xf32>
    %561 = vector.extract_strided_slice %4 {offsets = [0, 0, 0], sizes = [1, 4, 256], strides = [1, 1, 1]} : vector<8x4x256xf32> to vector<1x4x256xf32>
    %562 = vector.shape_cast %561 : vector<1x4x256xf32> to vector<4x256xf32>
    %563 = vector.extract_strided_slice %562 {offsets = [0, 0], sizes = [1, 256], strides = [1, 1]} : vector<4x256xf32> to vector<1x256xf32>
    %564 = vector.extract_strided_slice %560 {offsets = [0, 0], sizes = [1, 256], strides = [1, 1]} : vector<4x256xf32> to vector<1x256xf32>
    %565 = arith.mulf %563, %564 : vector<1x256xf32>
    %566 = vector.extract_strided_slice %562 {offsets = [1, 0], sizes = [1, 256], strides = [1, 1]} : vector<4x256xf32> to vector<1x256xf32>
    %567 = vector.extract_strided_slice %560 {offsets = [1, 0], sizes = [1, 256], strides = [1, 1]} : vector<4x256xf32> to vector<1x256xf32>
    %568 = arith.mulf %566, %567 : vector<1x256xf32>
    %569 = arith.addf %565, %568 : vector<1x256xf32>
    %570 = vector.extract_strided_slice %562 {offsets = [2, 0], sizes = [1, 256], strides = [1, 1]} : vector<4x256xf32> to vector<1x256xf32>
    %571 = vector.extract_strided_slice %560 {offsets = [2, 0], sizes = [1, 256], strides = [1, 1]} : vector<4x256xf32> to vector<1x256xf32>
    %572 = arith.mulf %570, %571 : vector<1x256xf32>
    %573 = arith.addf %569, %572 : vector<1x256xf32>
    %574 = vector.extract_strided_slice %562 {offsets = [3, 0], sizes = [1, 256], strides = [1, 1]} : vector<4x256xf32> to vector<1x256xf32>
    %575 = vector.extract_strided_slice %560 {offsets = [3, 0], sizes = [1, 256], strides = [1, 1]} : vector<4x256xf32> to vector<1x256xf32>
    %576 = arith.mulf %574, %575 : vector<1x256xf32>
    %577 = arith.addf %573, %576 : vector<1x256xf32>
    %578 = vector.extract_strided_slice %4 {offsets = [1, 0, 0], sizes = [1, 4, 256], strides = [1, 1, 1]} : vector<8x4x256xf32> to vector<1x4x256xf32>
    %579 = vector.shape_cast %578 : vector<1x4x256xf32> to vector<4x256xf32>
    %580 = vector.extract_strided_slice %579 {offsets = [0, 0], sizes = [1, 256], strides = [1, 1]} : vector<4x256xf32> to vector<1x256xf32>
    %581 = vector.extract_strided_slice %560 {offsets = [0, 0], sizes = [1, 256], strides = [1, 1]} : vector<4x256xf32> to vector<1x256xf32>
    %582 = arith.mulf %580, %581 : vector<1x256xf32>
    %583 = vector.extract_strided_slice %579 {offsets = [1, 0], sizes = [1, 256], strides = [1, 1]} : vector<4x256xf32> to vector<1x256xf32>
    %584 = vector.extract_strided_slice %560 {offsets = [1, 0], sizes = [1, 256], strides = [1, 1]} : vector<4x256xf32> to vector<1x256xf32>
    %585 = arith.mulf %583, %584 : vector<1x256xf32>
    %586 = arith.addf %582, %585 : vector<1x256xf32>
    %587 = vector.extract_strided_slice %579 {offsets = [2, 0], sizes = [1, 256], strides = [1, 1]} : vector<4x256xf32> to vector<1x256xf32>
    %588 = vector.extract_strided_slice %560 {offsets = [2, 0], sizes = [1, 256], strides = [1, 1]} : vector<4x256xf32> to vector<1x256xf32>
    %589 = arith.mulf %587, %588 : vector<1x256xf32>
    %590 = arith.addf %586, %589 : vector<1x256xf32>
    %591 = vector.extract_strided_slice %579 {offsets = [3, 0], sizes = [1, 256], strides = [1, 1]} : vector<4x256xf32> to vector<1x256xf32>
    %592 = vector.extract_strided_slice %560 {offsets = [3, 0], sizes = [1, 256], strides = [1, 1]} : vector<4x256xf32> to vector<1x256xf32>
    %593 = arith.mulf %591, %592 : vector<1x256xf32>
    %594 = arith.addf %590, %593 : vector<1x256xf32>
    %595 = vector.extract_strided_slice %4 {offsets = [2, 0, 0], sizes = [1, 4, 256], strides = [1, 1, 1]} : vector<8x4x256xf32> to vector<1x4x256xf32>
    %596 = vector.shape_cast %595 : vector<1x4x256xf32> to vector<4x256xf32>
    %597 = vector.extract_strided_slice %596 {offsets = [0, 0], sizes = [1, 256], strides = [1, 1]} : vector<4x256xf32> to vector<1x256xf32>
    %598 = vector.extract_strided_slice %560 {offsets = [0, 0], sizes = [1, 256], strides = [1, 1]} : vector<4x256xf32> to vector<1x256xf32>
    %599 = arith.mulf %597, %598 : vector<1x256xf32>
    %600 = vector.extract_strided_slice %596 {offsets = [1, 0], sizes = [1, 256], strides = [1, 1]} : vector<4x256xf32> to vector<1x256xf32>
    %601 = vector.extract_strided_slice %560 {offsets = [1, 0], sizes = [1, 256], strides = [1, 1]} : vector<4x256xf32> to vector<1x256xf32>
    %602 = arith.mulf %600, %601 : vector<1x256xf32>
    %603 = arith.addf %599, %602 : vector<1x256xf32>
    %604 = vector.extract_strided_slice %596 {offsets = [2, 0], sizes = [1, 256], strides = [1, 1]} : vector<4x256xf32> to vector<1x256xf32>
    %605 = vector.extract_strided_slice %560 {offsets = [2, 0], sizes = [1, 256], strides = [1, 1]} : vector<4x256xf32> to vector<1x256xf32>
    %606 = arith.mulf %604, %605 : vector<1x256xf32>
    %607 = arith.addf %603, %606 : vector<1x256xf32>
    %608 = vector.extract_strided_slice %596 {offsets = [3, 0], sizes = [1, 256], strides = [1, 1]} : vector<4x256xf32> to vector<1x256xf32>
    %609 = vector.extract_strided_slice %560 {offsets = [3, 0], sizes = [1, 256], strides = [1, 1]} : vector<4x256xf32> to vector<1x256xf32>
    %610 = arith.mulf %608, %609 : vector<1x256xf32>
    %611 = arith.addf %607, %610 : vector<1x256xf32>
    %612 = vector.extract_strided_slice %4 {offsets = [3, 0, 0], sizes = [1, 4, 256], strides = [1, 1, 1]} : vector<8x4x256xf32> to vector<1x4x256xf32>
    %613 = vector.shape_cast %612 : vector<1x4x256xf32> to vector<4x256xf32>
    %614 = vector.extract_strided_slice %613 {offsets = [0, 0], sizes = [1, 256], strides = [1, 1]} : vector<4x256xf32> to vector<1x256xf32>
    %615 = vector.extract_strided_slice %560 {offsets = [0, 0], sizes = [1, 256], strides = [1, 1]} : vector<4x256xf32> to vector<1x256xf32>
    %616 = arith.mulf %614, %615 : vector<1x256xf32>
    %617 = vector.extract_strided_slice %613 {offsets = [1, 0], sizes = [1, 256], strides = [1, 1]} : vector<4x256xf32> to vector<1x256xf32>
    %618 = vector.extract_strided_slice %560 {offsets = [1, 0], sizes = [1, 256], strides = [1, 1]} : vector<4x256xf32> to vector<1x256xf32>
    %619 = arith.mulf %617, %618 : vector<1x256xf32>
    %620 = arith.addf %616, %619 : vector<1x256xf32>
    %621 = vector.extract_strided_slice %613 {offsets = [2, 0], sizes = [1, 256], strides = [1, 1]} : vector<4x256xf32> to vector<1x256xf32>
    %622 = vector.extract_strided_slice %560 {offsets = [2, 0], sizes = [1, 256], strides = [1, 1]} : vector<4x256xf32> to vector<1x256xf32>
    %623 = arith.mulf %621, %622 : vector<1x256xf32>
    %624 = arith.addf %620, %623 : vector<1x256xf32>
    %625 = vector.extract_strided_slice %613 {offsets = [3, 0], sizes = [1, 256], strides = [1, 1]} : vector<4x256xf32> to vector<1x256xf32>
    %626 = vector.extract_strided_slice %560 {offsets = [3, 0], sizes = [1, 256], strides = [1, 1]} : vector<4x256xf32> to vector<1x256xf32>
    %627 = arith.mulf %625, %626 : vector<1x256xf32>
    %628 = arith.addf %624, %627 : vector<1x256xf32>
    %629 = vector.extract_strided_slice %4 {offsets = [4, 0, 0], sizes = [1, 4, 256], strides = [1, 1, 1]} : vector<8x4x256xf32> to vector<1x4x256xf32>
    %630 = vector.shape_cast %629 : vector<1x4x256xf32> to vector<4x256xf32>
    %631 = vector.extract_strided_slice %630 {offsets = [0, 0], sizes = [1, 256], strides = [1, 1]} : vector<4x256xf32> to vector<1x256xf32>
    %632 = vector.extract_strided_slice %560 {offsets = [0, 0], sizes = [1, 256], strides = [1, 1]} : vector<4x256xf32> to vector<1x256xf32>
    %633 = arith.mulf %631, %632 : vector<1x256xf32>
    %634 = vector.extract_strided_slice %630 {offsets = [1, 0], sizes = [1, 256], strides = [1, 1]} : vector<4x256xf32> to vector<1x256xf32>
    %635 = vector.extract_strided_slice %560 {offsets = [1, 0], sizes = [1, 256], strides = [1, 1]} : vector<4x256xf32> to vector<1x256xf32>
    %636 = arith.mulf %634, %635 : vector<1x256xf32>
    %637 = arith.addf %633, %636 : vector<1x256xf32>
    %638 = vector.extract_strided_slice %630 {offsets = [2, 0], sizes = [1, 256], strides = [1, 1]} : vector<4x256xf32> to vector<1x256xf32>
    %639 = vector.extract_strided_slice %560 {offsets = [2, 0], sizes = [1, 256], strides = [1, 1]} : vector<4x256xf32> to vector<1x256xf32>
    %640 = arith.mulf %638, %639 : vector<1x256xf32>
    %641 = arith.addf %637, %640 : vector<1x256xf32>
    %642 = vector.extract_strided_slice %630 {offsets = [3, 0], sizes = [1, 256], strides = [1, 1]} : vector<4x256xf32> to vector<1x256xf32>
    %643 = vector.extract_strided_slice %560 {offsets = [3, 0], sizes = [1, 256], strides = [1, 1]} : vector<4x256xf32> to vector<1x256xf32>
    %644 = arith.mulf %642, %643 : vector<1x256xf32>
    %645 = arith.addf %641, %644 : vector<1x256xf32>
    %646 = vector.extract_strided_slice %4 {offsets = [5, 0, 0], sizes = [1, 4, 256], strides = [1, 1, 1]} : vector<8x4x256xf32> to vector<1x4x256xf32>
    %647 = vector.shape_cast %646 : vector<1x4x256xf32> to vector<4x256xf32>
    %648 = vector.extract_strided_slice %647 {offsets = [0, 0], sizes = [1, 256], strides = [1, 1]} : vector<4x256xf32> to vector<1x256xf32>
    %649 = vector.extract_strided_slice %560 {offsets = [0, 0], sizes = [1, 256], strides = [1, 1]} : vector<4x256xf32> to vector<1x256xf32>
    %650 = arith.mulf %648, %649 : vector<1x256xf32>
    %651 = vector.extract_strided_slice %647 {offsets = [1, 0], sizes = [1, 256], strides = [1, 1]} : vector<4x256xf32> to vector<1x256xf32>
    %652 = vector.extract_strided_slice %560 {offsets = [1, 0], sizes = [1, 256], strides = [1, 1]} : vector<4x256xf32> to vector<1x256xf32>
    %653 = arith.mulf %651, %652 : vector<1x256xf32>
    %654 = arith.addf %650, %653 : vector<1x256xf32>
    %655 = vector.extract_strided_slice %647 {offsets = [2, 0], sizes = [1, 256], strides = [1, 1]} : vector<4x256xf32> to vector<1x256xf32>
    %656 = vector.extract_strided_slice %560 {offsets = [2, 0], sizes = [1, 256], strides = [1, 1]} : vector<4x256xf32> to vector<1x256xf32>
    %657 = arith.mulf %655, %656 : vector<1x256xf32>
    %658 = arith.addf %654, %657 : vector<1x256xf32>
    %659 = vector.extract_strided_slice %647 {offsets = [3, 0], sizes = [1, 256], strides = [1, 1]} : vector<4x256xf32> to vector<1x256xf32>
    %660 = vector.extract_strided_slice %560 {offsets = [3, 0], sizes = [1, 256], strides = [1, 1]} : vector<4x256xf32> to vector<1x256xf32>
    %661 = arith.mulf %659, %660 : vector<1x256xf32>
    %662 = arith.addf %658, %661 : vector<1x256xf32>
    %663 = vector.extract_strided_slice %4 {offsets = [6, 0, 0], sizes = [1, 4, 256], strides = [1, 1, 1]} : vector<8x4x256xf32> to vector<1x4x256xf32>
    %664 = vector.shape_cast %663 : vector<1x4x256xf32> to vector<4x256xf32>
    %665 = vector.extract_strided_slice %664 {offsets = [0, 0], sizes = [1, 256], strides = [1, 1]} : vector<4x256xf32> to vector<1x256xf32>
    %666 = vector.extract_strided_slice %560 {offsets = [0, 0], sizes = [1, 256], strides = [1, 1]} : vector<4x256xf32> to vector<1x256xf32>
    %667 = arith.mulf %665, %666 : vector<1x256xf32>
    %668 = vector.extract_strided_slice %664 {offsets = [1, 0], sizes = [1, 256], strides = [1, 1]} : vector<4x256xf32> to vector<1x256xf32>
    %669 = vector.extract_strided_slice %560 {offsets = [1, 0], sizes = [1, 256], strides = [1, 1]} : vector<4x256xf32> to vector<1x256xf32>
    %670 = arith.mulf %668, %669 : vector<1x256xf32>
    %671 = arith.addf %667, %670 : vector<1x256xf32>
    %672 = vector.extract_strided_slice %664 {offsets = [2, 0], sizes = [1, 256], strides = [1, 1]} : vector<4x256xf32> to vector<1x256xf32>
    %673 = vector.extract_strided_slice %560 {offsets = [2, 0], sizes = [1, 256], strides = [1, 1]} : vector<4x256xf32> to vector<1x256xf32>
    %674 = arith.mulf %672, %673 : vector<1x256xf32>
    %675 = arith.addf %671, %674 : vector<1x256xf32>
    %676 = vector.extract_strided_slice %664 {offsets = [3, 0], sizes = [1, 256], strides = [1, 1]} : vector<4x256xf32> to vector<1x256xf32>
    %677 = vector.extract_strided_slice %560 {offsets = [3, 0], sizes = [1, 256], strides = [1, 1]} : vector<4x256xf32> to vector<1x256xf32>
    %678 = arith.mulf %676, %677 : vector<1x256xf32>
    %679 = arith.addf %675, %678 : vector<1x256xf32>
    %680 = vector.extract_strided_slice %4 {offsets = [7, 0, 0], sizes = [1, 4, 256], strides = [1, 1, 1]} : vector<8x4x256xf32> to vector<1x4x256xf32>
    %681 = vector.shape_cast %680 : vector<1x4x256xf32> to vector<4x256xf32>
    %682 = vector.extract_strided_slice %681 {offsets = [0, 0], sizes = [1, 256], strides = [1, 1]} : vector<4x256xf32> to vector<1x256xf32>
    %683 = vector.extract_strided_slice %560 {offsets = [0, 0], sizes = [1, 256], strides = [1, 1]} : vector<4x256xf32> to vector<1x256xf32>
    %684 = arith.mulf %682, %683 : vector<1x256xf32>
    %685 = vector.extract_strided_slice %681 {offsets = [1, 0], sizes = [1, 256], strides = [1, 1]} : vector<4x256xf32> to vector<1x256xf32>
    %686 = vector.extract_strided_slice %560 {offsets = [1, 0], sizes = [1, 256], strides = [1, 1]} : vector<4x256xf32> to vector<1x256xf32>
    %687 = arith.mulf %685, %686 : vector<1x256xf32>
    %688 = arith.addf %684, %687 : vector<1x256xf32>
    %689 = vector.extract_strided_slice %681 {offsets = [2, 0], sizes = [1, 256], strides = [1, 1]} : vector<4x256xf32> to vector<1x256xf32>
    %690 = vector.extract_strided_slice %560 {offsets = [2, 0], sizes = [1, 256], strides = [1, 1]} : vector<4x256xf32> to vector<1x256xf32>
    %691 = arith.mulf %689, %690 : vector<1x256xf32>
    %692 = arith.addf %688, %691 : vector<1x256xf32>
    %693 = vector.extract_strided_slice %681 {offsets = [3, 0], sizes = [1, 256], strides = [1, 1]} : vector<4x256xf32> to vector<1x256xf32>
    %694 = vector.extract_strided_slice %560 {offsets = [3, 0], sizes = [1, 256], strides = [1, 1]} : vector<4x256xf32> to vector<1x256xf32>
    %695 = arith.mulf %693, %694 : vector<1x256xf32>
    %696 = arith.addf %692, %695 : vector<1x256xf32>
    %697 = tpu.concatenate %577, %594, %611, %628, %645, %662, %679, %696 in 0 : vector<1x256xf32>, vector<1x256xf32>, vector<1x256xf32>, vector<1x256xf32>, vector<1x256xf32>, vector<1x256xf32>, vector<1x256xf32>, vector<1x256xf32> -> vector<8x256xf32>
    %c1_167 = arith.constant 1 : index
    %c0_168 = arith.constant 0 : index
    %c0_169 = arith.constant 0 : index
    %698 = vector.load %arg8[%c1_167, %c0_168, %c0_169] : memref<2x8x256xf32, #tpu.memory_space<vmem>>, vector<1x8x256xf32>
    %699 = vector.shape_cast %698 : vector<1x8x256xf32> to vector<8x256xf32>
    %700 = vector.shape_cast %697 : vector<8x256xf32> to vector<1x8x256xf32>
    tpu.vector_store %arg8[%c1_167, %c0_168, %c0_169], %700 {strides = array<i32>} : memref<2x8x256xf32, #tpu.memory_space<vmem>>, vector<1x8x256xf32>,
    return
  }
}

</mosaic_0001>

<llo_original>
// kernel: restrictive_block_forward.1
$region0: #{restrictive_block_forward.1}
  #allocation0 [shape = 'u32[]', space=smem, size = 0x4, offset = 0x4, fixed_abs, tag = 'smem constant byte address 0x4 - core index']
  #allocation1 [shape = 'u32[144,128]{1,0:T(1,128)}', space=vmem, size = 0x12000, scoped, tag = 'internal scratch']
  %s0 = inlined_call_operand.vmem [shape: f32[2,4,256], index: 0, kind: input, shape index: {}]
  %s1 = inlined_call_operand.vmem [shape: f32[4,256], index: 1, kind: input, shape index: {}]
  %s2 = inlined_call_operand.vmem [shape: f32[4,256], index: 2, kind: input, shape index: {}]
  %s3 = inlined_call_operand.vmem [shape: f32[4,256], index: 3, kind: input, shape index: {}]
  %s4 = inlined_call_operand.vmem [shape: f32[4,256], index: 4, kind: input, shape index: {}]
  %s5 = inlined_call_operand.vmem [shape: f32[8,4,256], index: 5, kind: input, shape index: {}]
  %s6 = inlined_call_operand.vmem [shape: f32[4,4], index: 6, kind: input, shape index: {}]
  %s7 = inlined_call_operand.vmem [shape: f32[4,4], index: 7, kind: input, shape index: {}]
  %s8 = inlined_call_operand.vmem [shape: f32[2,8,256], index: 8, kind: output, shape index: {}]
  %s9 = sld [smem:[#allocation0]]
  $region50: #{restrictive_block_forward.1} parent=0
    _
  %s11 = ssub.s32 1, %s9
  %s12 = scalar_select 0, %s11, %s9
  $region1: #{restrictive_block_forward.1} parent=0
    #allocation2 [shape = 'u8[2048]{0}', space=smem, size = 0x800, scoped, tag = 'input window, operand 6, single buffered']
    #allocation3 [shape = 's32[1]{0}', space=sflag, size = 0x4, scoped, tag = 'scoped memory for restrictive_block_forward.1']
    #allocation4 [shape = 'u8[2048]{0}', space=smem, size = 0x800, scoped, tag = 'input window, operand 7, single buffered']
    #allocation5 [shape = 's32[1]{0}', space=sflag, size = 0x4, scoped, tag = 'scoped memory for restrictive_block_forward.1']
    %13 = vsyncpa [#allocation3], 0
    %14 = vsyncpa [#allocation5], 0
    // Predicated region
    $region2: #{restrictive_block_forward.1} parent=1 // pred_check
      _
    $region3: #{restrictive_block_forward.1} parent=1 // pred_check_branch
      %16 = sbr.rel (0) target = $region5
    $region4: #{restrictive_block_forward.1} parent=1 // pred_region
      _
    $region5: #{restrictive_block_forward.1} parent=1 // pred_fallthru
      _
    // Predicated region
    $region6: #{restrictive_block_forward.1} parent=1 // pred_check
      _
    $region7: #{restrictive_block_forward.1} parent=1 // pred_check_branch
      %18 = sbr.rel (0) target = $region9
    $region8: #{restrictive_block_forward.1} parent=1 // pred_region
      _
    $region9: #{restrictive_block_forward.1} parent=1 // pred_fallthru
      _
    // Predicated region
    $region10: #{restrictive_block_forward.1} parent=1 // pred_check
      _
    $region11: #{restrictive_block_forward.1} parent=1 // pred_check_branch
      %20 = sbr.rel (0) target = $region13
    $region12: #{restrictive_block_forward.1} parent=1 // pred_region
      _
    $region13: #{restrictive_block_forward.1} parent=1 // pred_fallthru
      _
    // Predicated region
    $region14: #{restrictive_block_forward.1} parent=1 // pred_check
      _
    $region15: #{restrictive_block_forward.1} parent=1 // pred_check_branch
      %22 = sbr.rel (0) target = $region17
    $region16: #{restrictive_block_forward.1} parent=1 // pred_region
      _
    $region17: #{restrictive_block_forward.1} parent=1 // pred_fallthru
      _
    // Predicated region
    $region18: #{restrictive_block_forward.1} parent=1 // pred_check
      _
    $region19: #{restrictive_block_forward.1} parent=1 // pred_check_branch
      %24 = sbr.rel (0) target = $region21
    $region20: #{restrictive_block_forward.1} parent=1 // pred_region
      _
    $region21: #{restrictive_block_forward.1} parent=1 // pred_fallthru
      _
    // Predicated region
    $region22: #{restrictive_block_forward.1} parent=1 // pred_check
      _
    $region23: #{restrictive_block_forward.1} parent=1 // pred_check_branch
      %26 = sbr.rel (0) target = $region25
    $region24: #{restrictive_block_forward.1} parent=1 // pred_region
      _
    $region25: #{restrictive_block_forward.1} parent=1 // pred_fallthru
      _
    // Predicated region
    $region26: #{restrictive_block_forward.1} parent=1 // pred_check
      _
    $region27: #{restrictive_block_forward.1} parent=1 // pred_check_branch
      %28 = sbr.rel (0) target = $region29
    $region28: #{restrictive_block_forward.1} parent=1 // pred_region
      %s30 = ssub.s32 64, 64
      %31 = vsyncadd [#allocation3], %s30
      %s33 = sshll.u32 %s6, 4
      %s34 = int_to_ptr.vmem [resolvable:$true] %s33
      %36 = dma.vmem_to_smem %s34, 64, [#allocation2], [#allocation3]
    $region29: #{restrictive_block_forward.1} parent=1 // pred_fallthru
      _
    // Predicated region
    $region30: #{restrictive_block_forward.1} parent=1 // pred_check
      _
    $region31: #{restrictive_block_forward.1} parent=1 // pred_check_branch
      %38 = sbr.rel (0) target = $region33
    $region32: #{restrictive_block_forward.1} parent=1 // pred_region
      %s40 = ssub.s32 64, 64
      %41 = vsyncadd [#allocation5], %s40
      %s43 = sshll.u32 %s7, 4
      %s44 = int_to_ptr.vmem [resolvable:$true] %s43
      %46 = dma.vmem_to_smem %s44, 64, [#allocation4], [#allocation5]
    $region33: #{restrictive_block_forward.1} parent=1 // pred_fallthru
      _
    // Predicated region
    $region34: #{restrictive_block_forward.1} parent=1 // pred_check
      _
    $region35: #{restrictive_block_forward.1} parent=1 // pred_check_branch
      %48 = sbr.rel (0) target = $region37
    $region36: #{restrictive_block_forward.1} parent=1 // pred_region
      %49 = dma.done [#allocation3], 64
    $region37: #{restrictive_block_forward.1} parent=1 // pred_fallthru
      _
    // Predicated region
    $region38: #{restrictive_block_forward.1} parent=1 // pred_check
      _
    $region39: #{restrictive_block_forward.1} parent=1 // pred_check_branch
      %51 = sbr.rel (0) target = $region41
    $region40: #{restrictive_block_forward.1} parent=1 // pred_region
      %52 = dma.done [#allocation5], 64
    $region41: #{restrictive_block_forward.1} parent=1 // pred_fallthru
      _
    %53 = sfence
    %v54 = vld [vmem:[%s1] sm:$0xff]
    %v55 = vld [vmem:[%s2] sm:$0xff]
    %v56 = vld [vmem:[%s3] sm:$0xff]
    %v57 = vld [vmem:[%s4] sm:$0xff]
    %v58 = vld [vmem:[%s5] sm:$0xff]
    %v59 = vld [vmem:[%s5 + $0x8] sm:$0xff]
    %v60 = vld [vmem:[%s5 + $0x10] sm:$0xff]
    %v61 = vld [vmem:[%s5 + $0x18] sm:$0xff]
    %v62 = vld [vmem:[%s5 + $0x20] sm:$0xff]
    %v63 = vld [vmem:[%s5 + $0x28] sm:$0xff]
    %v64 = vld [vmem:[%s5 + $0x30] sm:$0xff]
    %v65 = vld [vmem:[%s5 + $0x38] sm:$0xff]
    %v66 = vld [vmem:[%s0] sm:$0xff]
    %v68 = vcombine.high %v66, %v66
    %vm70 = vcmask 1043456
    %v71 = vsel %vm70, %v66, 0.0
    %v72 = vsel %vm70, %v68, 0.0
    %v73 = vadd.f32 %v71, %v72
    %74 = vadd.xlane.f32.xlu0 %v73
    %v75 = vpop.xlane.xlu0 %74
    %v76 = vrot.slane %v75, 4
    %v77 = vadd.f32 %v75, %v76
    %v78 = vrot.slane %v77, 2
    %v79 = vadd.f32 %v77, %v78
    %v80 = vrot.slane %v79, 1
    %v81 = vadd.f32 %v79, %v80
    %s82 = vtos %v81
    %v83 = vmul.f32 %v66, %v66
    %v85 = vcombine.high %v83, %v83
    %v87 = vsel %vm70, %v83, 0.0
    %v88 = vsel %vm70, %v85, 0.0
    %v89 = vadd.f32 %v87, %v88
    %90 = vadd.xlane.f32.xlu0 %v89
    %v91 = vpop.xlane.xlu0 %90
    %v92 = vrot.slane %v91, 4
    %v93 = vadd.f32 %v91, %v92
    %v94 = vrot.slane %v93, 2
    %v95 = vadd.f32 %v93, %v94
    %v96 = vrot.slane %v95, 1
    %v97 = vadd.f32 %v95, %v96
    %s98 = vtos %v97
    %s99 = smul.f32 %s82, 0.0009765625
    %s100 = smul.f32 %s98, 0.0009765625
    %s101 = smul.f32 %s99, %s99
    %s102 = ssub.f32 %s100, %s101
    %s103 = smax.f32 %s102, 0.0
    %v104 = vstv %s99
    %v105 = vsub.f32 %v66, %v104
    %s106 = sadd.f32 %s103, 1e-05
    %v107 = vstv %s106
    %v108 = vrsqrt.pop %v107
    %s109 = vtos %v108
    %v110 = vstv %s109
    %v111 = vmul.f32 %v110, %v54
    %v112 = vmul.f32 %v105, %v111
    %v113 = vadd.f32 %v112, %v55
    %s114 = sld [smem:[#allocation2]]
    %v115 = vstv %s114
    %v116 = vmul.f32 %v115, %v113
    %s117 = sld [smem:[#allocation2 + $0x1]]
    %v118 = vstv %s117
    %v119 = vmul.f32 %v118, %v113
    %v121 = vrot.slane %v119, 5
    %v122 = vrot.slane %v121, 4
    %v124 = vadd.f32 %v116, %v122
    %s125 = sld [smem:[#allocation2 + $0x2]]
    %v126 = vstv %s125
    %v127 = vmul.f32 %v126, %v113
    %v129 = vrot.slane %v127, 6
    %v130 = vrot.slane %v129, 4
    %v132 = vadd.f32 %v124, %v130
    %s133 = sld [smem:[#allocation2 + $0x3]]
    %v134 = vstv %s133
    %v135 = vmul.f32 %v134, %v113
    %v137 = vrot.slane %v135, 7
    %v138 = vrot.slane %v137, 4
    %v140 = vadd.f32 %v132, %v138
    %s141 = sld [smem:[#allocation2 + $0x80]]
    %v142 = vstv %s141
    %v143 = vmul.f32 %v142, %v113
    %s144 = sld [smem:[#allocation2 + $0x81]]
    %v145 = vstv %s144
    %v146 = vmul.f32 %v145, %v113
    %v148 = vrot.slane %v146, 5
    %v149 = vrot.slane %v148, 4
    %v151 = vadd.f32 %v143, %v149
    %s152 = sld [smem:[#allocation2 + $0x82]]
    %v153 = vstv %s152
    %v154 = vmul.f32 %v153, %v113
    %v156 = vrot.slane %v154, 6
    %v157 = vrot.slane %v156, 4
    %v159 = vadd.f32 %v151, %v157
    %s160 = sld [smem:[#allocation2 + $0x83]]
    %v161 = vstv %s160
    %v162 = vmul.f32 %v161, %v113
    %v164 = vrot.slane %v162, 7
    %v165 = vrot.slane %v164, 4
    %v167 = vadd.f32 %v159, %v165
    %s168 = sld [smem:[#allocation2 + $0x100]]
    %v169 = vstv %s168
    %v170 = vmul.f32 %v169, %v113
    %s171 = sld [smem:[#allocation2 + $0x101]]
    %v172 = vstv %s171
    %v173 = vmul.f32 %v172, %v113
    %v175 = vrot.slane %v173, 5
    %v176 = vrot.slane %v175, 4
    %v178 = vadd.f32 %v170, %v176
    %s179 = sld [smem:[#allocation2 + $0x102]]
    %v180 = vstv %s179
    %v181 = vmul.f32 %v180, %v113
    %v183 = vrot.slane %v181, 6
    %v184 = vrot.slane %v183, 4
    %v186 = vadd.f32 %v178, %v184
    %s187 = sld [smem:[#allocation2 + $0x103]]
    %v188 = vstv %s187
    %v189 = vmul.f32 %v188, %v113
    %v191 = vrot.slane %v189, 7
    %v192 = vrot.slane %v191, 4
    %v194 = vadd.f32 %v186, %v192
    %s195 = sld [smem:[#allocation2 + $0x180]]
    %v196 = vstv %s195
    %v197 = vmul.f32 %v196, %v113
    %s198 = sld [smem:[#allocation2 + $0x181]]
    %v199 = vstv %s198
    %v200 = vmul.f32 %v199, %v113
    %v202 = vrot.slane %v200, 5
    %v203 = vrot.slane %v202, 4
    %v205 = vadd.f32 %v197, %v203
    %s206 = sld [smem:[#allocation2 + $0x182]]
    %v207 = vstv %s206
    %v208 = vmul.f32 %v207, %v113
    %v210 = vrot.slane %v208, 6
    %v211 = vrot.slane %v210, 4
    %v213 = vadd.f32 %v205, %v211
    %s214 = sld [smem:[#allocation2 + $0x183]]
    %v215 = vstv %s214
    %v216 = vmul.f32 %v215, %v113
    %v218 = vrot.slane %v216, 7
    %v219 = vrot.slane %v218, 4
    %v221 = vadd.f32 %v213, %v219
    %v223 = vlaneseq
    %v224 = vshrl.u32 %v223, 7
    %v225 = vsub.s32 0, %v224
    %v226 = vrot.slane %v140, %v225
    %v227 = vlaneseq
    %v228 = vshrl.u32 %v227, 7
    %v229 = vsub.s32 4, %v228
    %v230 = vrot.slane %v140, %v229
    %v234 = vlaneseq
    %v235 = vshrl.u32 %v234, 7
    %v236 = vsub.s32 0, %v235
    %v237 = vrot.slane %v167, %v236
    %v238 = vlaneseq
    %v239 = vshrl.u32 %v238, 7
    %v240 = vsub.s32 4, %v239
    %v241 = vrot.slane %v167, %v240
    %v245 = vlaneseq
    %v246 = vshrl.u32 %v245, 7
    %v247 = vsub.s32 0, %v246
    %v248 = vrot.slane %v194, %v247
    %v249 = vlaneseq
    %v250 = vshrl.u32 %v249, 7
    %v251 = vsub.s32 4, %v250
    %v252 = vrot.slane %v194, %v251
    %v256 = vlaneseq
    %v257 = vshrl.u32 %v256, 7
    %v258 = vsub.s32 0, %v257
    %v259 = vrot.slane %v221, %v258
    %v260 = vlaneseq
    %v261 = vshrl.u32 %v260, 7
    %v262 = vsub.s32 4, %v261
    %v263 = vrot.slane %v221, %v262
    %vm266 = vcmask 1040384
    %v267 = vsel %vm266, %v226, %v237
    %v268 = vsel %vm266, %v230, %v241
    %vm269 = vcmask 1041408
    %v270 = vsel %vm269, %v267, %v248
    %v271 = vsel %vm269, %v268, %v252
    %vm272 = vcmask 1042432
    %v273 = vsel %vm272, %v270, %v259
    %v274 = vsel %vm272, %v271, %v263
    %v275 = vsel %vm70, %v273, 0.0
    %v276 = vsel %vm70, %v274, 0.0
    %v277 = vadd.f32 %v275, %v276
    %278 = vadd.xlane.f32.xlu0 %v277
    %v279 = vpop.xlane.xlu0 %278
    %v280 = vrot.slane %v279, 4
    %v281 = vadd.f32 %v279, %v280
    %v282 = vrot.slane %v281, 2
    %v283 = vadd.f32 %v281, %v282
    %v284 = vrot.slane %v283, 1
    %v285 = vadd.f32 %v283, %v284
    %s286 = vtos %v285
    %v287 = vmul.f32 %v273, %v273
    %v288 = vmul.f32 %v274, %v274
    %v289 = vsel %vm70, %v287, 0.0
    %v290 = vsel %vm70, %v288, 0.0
    %v291 = vadd.f32 %v289, %v290
    %292 = vadd.xlane.f32.xlu0 %v291
    %v293 = vpop.xlane.xlu0 %292
    %v294 = vrot.slane %v293, 4
    %v295 = vadd.f32 %v293, %v294
    %v296 = vrot.slane %v295, 2
    %v297 = vadd.f32 %v295, %v296
    %v298 = vrot.slane %v297, 1
    %v299 = vadd.f32 %v297, %v298
    %s300 = vtos %v299
    %s301 = smul.f32 %s286, 0.0009765625
    %s302 = smul.f32 %s300, 0.0009765625
    %s303 = smul.f32 %s301, %s301
    %s304 = ssub.f32 %s302, %s303
    %s305 = smax.f32 %s304, 0.0
    %v306 = vstv %s301
    %v307 = vsub.f32 %v273, %v306
    %v308 = vsub.f32 %v274, %v306
    %s309 = sadd.f32 %s305, 1e-05
    %v310 = vstv %s309
    %v311 = vrsqrt.pop %v310
    %s312 = vtos %v311
    %v313 = vstv %s312
    %v314 = vmul.f32 %v313, %v56
    %v316 = vcombine.high %v314, %v314
    %v318 = vmul.f32 %v307, %v314
    %v319 = vmul.f32 %v308, %v316
    %v321 = vcombine.high %v57, %v57
    %v323 = vadd.f32 %v318, %v57
    %v324 = vadd.f32 %v319, %v321
    %s325 = sld [smem:[#allocation4]]
    %v326 = vstv %s325
    %v327 = vmul.f32 %v326, %v323
    %v328 = vmul.f32 %v326, %v324
    %s329 = sld [smem:[#allocation4 + $0x1]]
    %v330 = vstv %s329
    %v331 = vmul.f32 %v330, %v323
    %v332 = vmul.f32 %v330, %v324
    %v335 = vrot.slane %v331, 1
    %v336 = vrot.slane %v332, 1
    %v339 = vadd.f32 %v327, %v335
    %v340 = vadd.f32 %v328, %v336
    %s341 = sld [smem:[#allocation4 + $0x2]]
    %v342 = vstv %s341
    %v343 = vmul.f32 %v342, %v323
    %v344 = vmul.f32 %v342, %v324
    %v347 = vrot.slane %v343, 2
    %v348 = vrot.slane %v344, 2
    %v351 = vadd.f32 %v339, %v347
    %v352 = vadd.f32 %v340, %v348
    %s353 = sld [smem:[#allocation4 + $0x3]]
    %v354 = vstv %s353
    %v355 = vmul.f32 %v354, %v323
    %v356 = vmul.f32 %v354, %v324
    %v359 = vrot.slane %v355, 3
    %v360 = vrot.slane %v356, 3
    %v363 = vadd.f32 %v351, %v359
    %v364 = vadd.f32 %v352, %v360
    %v365 = vlaneseq
    %v366 = vshrl.u32 %v365, 7
    %v367 = vsub.s32 0, %v366
    %v368 = vrot.slane %v66, %v367
    %v369 = vlaneseq
    %v370 = vshrl.u32 %v369, 7
    %v371 = vsub.s32 4, %v370
    %v372 = vrot.slane %v66, %v371
    %v375 = vadd.f32 %v363, %v368
    %v376 = vadd.f32 %v364, %v372
    %s377 = sld [smem:[#allocation4 + $0x80]]
    %v378 = vstv %s377
    %v379 = vmul.f32 %v378, %v323
    %v380 = vmul.f32 %v378, %v324
    %s381 = sld [smem:[#allocation4 + $0x81]]
    %v382 = vstv %s381
    %v383 = vmul.f32 %v382, %v323
    %v384 = vmul.f32 %v382, %v324
    %v387 = vrot.slane %v383, 1
    %v388 = vrot.slane %v384, 1
    %v391 = vadd.f32 %v379, %v387
    %v392 = vadd.f32 %v380, %v388
    %s393 = sld [smem:[#allocation4 + $0x82]]
    %v394 = vstv %s393
    %v395 = vmul.f32 %v394, %v323
    %v396 = vmul.f32 %v394, %v324
    %v399 = vrot.slane %v395, 2
    %v400 = vrot.slane %v396, 2
    %v403 = vadd.f32 %v391, %v399
    %v404 = vadd.f32 %v392, %v400
    %s405 = sld [smem:[#allocation4 + $0x83]]
    %v406 = vstv %s405
    %v407 = vmul.f32 %v406, %v323
    %v408 = vmul.f32 %v406, %v324
    %v411 = vrot.slane %v407, 3
    %v412 = vrot.slane %v408, 3
    %v415 = vadd.f32 %v403, %v411
    %v416 = vadd.f32 %v404, %v412
    %v417 = vlaneseq
    %v418 = vshrl.u32 %v417, 7
    %v419 = vsub.s32 1, %v418
    %v420 = vrot.slane %v66, %v419
    %v421 = vlaneseq
    %v422 = vshrl.u32 %v421, 7
    %v423 = vsub.s32 5, %v422
    %v424 = vrot.slane %v66, %v423
    %v427 = vadd.f32 %v415, %v420
    %v428 = vadd.f32 %v416, %v424
    %s429 = sld [smem:[#allocation4 + $0x100]]
    %v430 = vstv %s429
    %v431 = vmul.f32 %v430, %v323
    %v432 = vmul.f32 %v430, %v324
    %s433 = sld [smem:[#allocation4 + $0x101]]
    %v434 = vstv %s433
    %v435 = vmul.f32 %v434, %v323
    %v436 = vmul.f32 %v434, %v324
    %v439 = vrot.slane %v435, 1
    %v440 = vrot.slane %v436, 1
    %v443 = vadd.f32 %v431, %v439
    %v444 = vadd.f32 %v432, %v440
    %s445 = sld [smem:[#allocation4 + $0x102]]
    %v446 = vstv %s445
    %v447 = vmul.f32 %v446, %v323
    %v448 = vmul.f32 %v446, %v324
    %v451 = vrot.slane %v447, 2
    %v452 = vrot.slane %v448, 2
    %v455 = vadd.f32 %v443, %v451
    %v456 = vadd.f32 %v444, %v452
    %s457 = sld [smem:[#allocation4 + $0x103]]
    %v458 = vstv %s457
    %v459 = vmul.f32 %v458, %v323
    %v460 = vmul.f32 %v458, %v324
    %v463 = vrot.slane %v459, 3
    %v464 = vrot.slane %v460, 3
    %v467 = vadd.f32 %v455, %v463
    %v468 = vadd.f32 %v456, %v464
    %v469 = vlaneseq
    %v470 = vshrl.u32 %v469, 7
    %v471 = vsub.s32 2, %v470
    %v472 = vrot.slane %v66, %v471
    %v473 = vlaneseq
    %v474 = vshrl.u32 %v473, 7
    %v475 = vsub.s32 6, %v474
    %v476 = vrot.slane %v66, %v475
    %v479 = vadd.f32 %v467, %v472
    %v480 = vadd.f32 %v468, %v476
    %s481 = sld [smem:[#allocation4 + $0x180]]
    %v482 = vstv %s481
    %v483 = vmul.f32 %v482, %v323
    %v484 = vmul.f32 %v482, %v324
    %s485 = sld [smem:[#allocation4 + $0x181]]
    %v486 = vstv %s485
    %v487 = vmul.f32 %v486, %v323
    %v488 = vmul.f32 %v486, %v324
    %v491 = vrot.slane %v487, 1
    %v492 = vrot.slane %v488, 1
    %v495 = vadd.f32 %v483, %v491
    %v496 = vadd.f32 %v484, %v492
    %s497 = sld [smem:[#allocation4 + $0x182]]
    %v498 = vstv %s497
    %v499 = vmul.f32 %v498, %v323
    %v500 = vmul.f32 %v498, %v324
    %v503 = vrot.slane %v499, 2
    %v504 = vrot.slane %v500, 2
    %v507 = vadd.f32 %v495, %v503
    %v508 = vadd.f32 %v496, %v504
    %s509 = sld [smem:[#allocation4 + $0x183]]
    %v510 = vstv %s509
    %v511 = vmul.f32 %v510, %v323
    %v512 = vmul.f32 %v510, %v324
    %v515 = vrot.slane %v511, 3
    %v516 = vrot.slane %v512, 3
    %v519 = vadd.f32 %v507, %v515
    %v520 = vadd.f32 %v508, %v516
    %v521 = vlaneseq
    %v522 = vshrl.u32 %v521, 7
    %v523 = vsub.s32 3, %v522
    %v524 = vrot.slane %v66, %v523
    %v525 = vlaneseq
    %v526 = vshrl.u32 %v525, 7
    %v527 = vsub.s32 7, %v526
    %v528 = vrot.slane %v66, %v527
    %v531 = vadd.f32 %v519, %v524
    %v532 = vadd.f32 %v520, %v528
    %v535 = vrot.slane %v427, 7
    %v536 = vrot.slane %v428, 7
    %v541 = vrot.slane %v479, 6
    %v542 = vrot.slane %v480, 6
    %v547 = vrot.slane %v531, 5
    %v548 = vrot.slane %v532, 5
    %v551 = vsel %vm266, %v375, %v535
    %v552 = vsel %vm266, %v376, %v536
    %v553 = vsel %vm269, %v551, %v541
    %v554 = vsel %vm269, %v552, %v542
    %v555 = vsel %vm272, %v553, %v547
    %v556 = vsel %vm272, %v554, %v548
    %v559 = vcombine.low %v555, %v556
    %v561 = vmul.f32 %v58, %v559
    %v563 = vrot.slane %v561, 5
    %v564 = vrot.slane %v563, 4
    %v566 = vadd.f32 %v561, %v564
    %v567 = vrot.slane %v561, 6
    %v568 = vrot.slane %v567, 4
    %v570 = vadd.f32 %v566, %v568
    %v571 = vrot.slane %v561, 7
    %v572 = vrot.slane %v571, 4
    %v574 = vadd.f32 %v570, %v572
    %v575 = vmul.f32 %v59, %v559
    %v577 = vrot.slane %v575, 5
    %v578 = vrot.slane %v577, 4
    %v580 = vadd.f32 %v575, %v578
    %v581 = vrot.slane %v575, 6
    %v582 = vrot.slane %v581, 4
    %v584 = vadd.f32 %v580, %v582
    %v585 = vrot.slane %v575, 7
    %v586 = vrot.slane %v585, 4
    %v588 = vadd.f32 %v584, %v586
    %v589 = vmul.f32 %v60, %v559
    %v591 = vrot.slane %v589, 5
    %v592 = vrot.slane %v591, 4
    %v594 = vadd.f32 %v589, %v592
    %v595 = vrot.slane %v589, 6
    %v596 = vrot.slane %v595, 4
    %v598 = vadd.f32 %v594, %v596
    %v599 = vrot.slane %v589, 7
    %v600 = vrot.slane %v599, 4
    %v602 = vadd.f32 %v598, %v600
    %v603 = vmul.f32 %v61, %v559
    %v605 = vrot.slane %v603, 5
    %v606 = vrot.slane %v605, 4
    %v608 = vadd.f32 %v603, %v606
    %v609 = vrot.slane %v603, 6
    %v610 = vrot.slane %v609, 4
    %v612 = vadd.f32 %v608, %v610
    %v613 = vrot.slane %v603, 7
    %v614 = vrot.slane %v613, 4
    %v616 = vadd.f32 %v612, %v614
    %v617 = vmul.f32 %v62, %v559
    %v619 = vrot.slane %v617, 5
    %v620 = vrot.slane %v619, 4
    %v622 = vadd.f32 %v617, %v620
    %v623 = vrot.slane %v617, 6
    %v624 = vrot.slane %v623, 4
    %v626 = vadd.f32 %v622, %v624
    %v627 = vrot.slane %v617, 7
    %v628 = vrot.slane %v627, 4
    %v630 = vadd.f32 %v626, %v628
    %v631 = vmul.f32 %v63, %v559
    %v633 = vrot.slane %v631, 5
    %v634 = vrot.slane %v633, 4
    %v636 = vadd.f32 %v631, %v634
    %v637 = vrot.slane %v631, 6
    %v638 = vrot.slane %v637, 4
    %v640 = vadd.f32 %v636, %v638
    %v641 = vrot.slane %v631, 7
    %v642 = vrot.slane %v641, 4
    %v644 = vadd.f32 %v640, %v642
    %v645 = vmul.f32 %v64, %v559
    %v647 = vrot.slane %v645, 5
    %v648 = vrot.slane %v647, 4
    %v650 = vadd.f32 %v645, %v648
    %v651 = vrot.slane %v645, 6
    %v652 = vrot.slane %v651, 4
    %v654 = vadd.f32 %v650, %v652
    %v655 = vrot.slane %v645, 7
    %v656 = vrot.slane %v655, 4
    %v658 = vadd.f32 %v654, %v656
    %v659 = vmul.f32 %v65, %v559
    %v661 = vrot.slane %v659, 5
    %v662 = vrot.slane %v661, 4
    %v664 = vadd.f32 %v659, %v662
    %v665 = vrot.slane %v659, 6
    %v666 = vrot.slane %v665, 4
    %v668 = vadd.f32 %v664, %v666
    %v669 = vrot.slane %v659, 7
    %v670 = vrot.slane %v669, 4
    %v672 = vadd.f32 %v668, %v670
    %v674 = vlaneseq
    %v675 = vshrl.u32 %v674, 7
    %v676 = vsub.s32 0, %v675
    %v677 = vrot.slane %v574, %v676
    %v678 = vlaneseq
    %v679 = vshrl.u32 %v678, 7
    %v680 = vsub.s32 4, %v679
    %v681 = vrot.slane %v574, %v680
    %v685 = vlaneseq
    %v686 = vshrl.u32 %v685, 7
    %v687 = vsub.s32 0, %v686
    %v688 = vrot.slane %v588, %v687
    %v689 = vlaneseq
    %v690 = vshrl.u32 %v689, 7
    %v691 = vsub.s32 4, %v690
    %v692 = vrot.slane %v588, %v691
    %v696 = vlaneseq
    %v697 = vshrl.u32 %v696, 7
    %v698 = vsub.s32 0, %v697
    %v699 = vrot.slane %v602, %v698
    %v700 = vlaneseq
    %v701 = vshrl.u32 %v700, 7
    %v702 = vsub.s32 4, %v701
    %v703 = vrot.slane %v602, %v702
    %v707 = vlaneseq
    %v708 = vshrl.u32 %v707, 7
    %v709 = vsub.s32 0, %v708
    %v710 = vrot.slane %v616, %v709
    %v711 = vlaneseq
    %v712 = vshrl.u32 %v711, 7
    %v713 = vsub.s32 4, %v712
    %v714 = vrot.slane %v616, %v713
    %v718 = vlaneseq
    %v719 = vshrl.u32 %v718, 7
    %v720 = vsub.s32 0, %v719
    %v721 = vrot.slane %v630, %v720
    %v722 = vlaneseq
    %v723 = vshrl.u32 %v722, 7
    %v724 = vsub.s32 4, %v723
    %v725 = vrot.slane %v630, %v724
    %v729 = vlaneseq
    %v730 = vshrl.u32 %v729, 7
    %v731 = vsub.s32 0, %v730
    %v732 = vrot.slane %v644, %v731
    %v733 = vlaneseq
    %v734 = vshrl.u32 %v733, 7
    %v735 = vsub.s32 4, %v734
    %v736 = vrot.slane %v644, %v735
    %v740 = vlaneseq
    %v741 = vshrl.u32 %v740, 7
    %v742 = vsub.s32 0, %v741
    %v743 = vrot.slane %v658, %v742
    %v744 = vlaneseq
    %v745 = vshrl.u32 %v744, 7
    %v746 = vsub.s32 4, %v745
    %v747 = vrot.slane %v658, %v746
    %v751 = vlaneseq
    %v752 = vshrl.u32 %v751, 7
    %v753 = vsub.s32 0, %v752
    %v754 = vrot.slane %v672, %v753
    %v755 = vlaneseq
    %v756 = vshrl.u32 %v755, 7
    %v757 = vsub.s32 4, %v756
    %v758 = vrot.slane %v672, %v757
    %v761 = vsel %vm266, %v677, %v688
    %v762 = vsel %vm266, %v681, %v692
    %v763 = vsel %vm269, %v761, %v699
    %v764 = vsel %vm269, %v762, %v703
    %v765 = vsel %vm272, %v763, %v710
    %v766 = vsel %vm272, %v764, %v714
    %v767 = vsel %vm70, %v765, %v721
    %v768 = vsel %vm70, %v766, %v725
    %vm769 = vcmask 1044480
    %v770 = vsel %vm769, %v767, %v732
    %v771 = vsel %vm769, %v768, %v736
    %vm772 = vcmask 1045504
    %v773 = vsel %vm772, %v770, %v743
    %v774 = vsel %vm772, %v771, %v747
    %vm775 = vcmask 1046528
    %v776 = vsel %vm775, %v773, %v754
    %v777 = vsel %vm775, %v774, %v758
    %778 = vst [vmem:[%s8] sm:$0xff] %v776
    %779 = vst [vmem:[%s8 + $0x8] sm:$0xff] %v777
    %s780 = scalar_lea.vmem %s0, 8
    %v781 = vld [vmem:[%s780] sm:$0xff]
    %v783 = vcombine.high %v781, %v781
    %v785 = vsel %vm70, %v781, 0.0
    %v786 = vsel %vm70, %v783, 0.0
    %v787 = vadd.f32 %v785, %v786
    %788 = vadd.xlane.f32.xlu0 %v787
    %v789 = vpop.xlane.xlu0 %788
    %v790 = vrot.slane %v789, 4
    %v791 = vadd.f32 %v789, %v790
    %v792 = vrot.slane %v791, 2
    %v793 = vadd.f32 %v791, %v792
    %v794 = vrot.slane %v793, 1
    %v795 = vadd.f32 %v793, %v794
    %s796 = vtos %v795
    %v797 = vmul.f32 %v781, %v781
    %v799 = vcombine.high %v797, %v797
    %v801 = vsel %vm70, %v797, 0.0
    %v802 = vsel %vm70, %v799, 0.0
    %v803 = vadd.f32 %v801, %v802
    %804 = vadd.xlane.f32.xlu0 %v803
    %v805 = vpop.xlane.xlu0 %804
    %v806 = vrot.slane %v805, 4
    %v807 = vadd.f32 %v805, %v806
    %v808 = vrot.slane %v807, 2
    %v809 = vadd.f32 %v807, %v808
    %v810 = vrot.slane %v809, 1
    %v811 = vadd.f32 %v809, %v810
    %s812 = vtos %v811
    %s813 = smul.f32 %s796, 0.0009765625
    %s814 = smul.f32 %s812, 0.0009765625
    %s815 = smul.f32 %s813, %s813
    %s816 = ssub.f32 %s814, %s815
    %s817 = smax.f32 %s816, 0.0
    %v818 = vstv %s813
    %v819 = vsub.f32 %v781, %v818
    %s820 = sadd.f32 %s817, 1e-05
    %v821 = vstv %s820
    %v822 = vrsqrt.pop %v821
    %s823 = vtos %v822
    %v824 = vstv %s823
    %v825 = vmul.f32 %v824, %v54
    %v826 = vmul.f32 %v819, %v825
    %v827 = vadd.f32 %v826, %v55
    %s828 = sld [smem:[#allocation2]]
    %v829 = vstv %s828
    %v830 = vmul.f32 %v829, %v827
    %s831 = sld [smem:[#allocation2 + $0x1]]
    %v832 = vstv %s831
    %v833 = vmul.f32 %v832, %v827
    %v835 = vrot.slane %v833, 5
    %v836 = vrot.slane %v835, 4
    %v838 = vadd.f32 %v830, %v836
    %s839 = sld [smem:[#allocation2 + $0x2]]
    %v840 = vstv %s839
    %v841 = vmul.f32 %v840, %v827
    %v843 = vrot.slane %v841, 6
    %v844 = vrot.slane %v843, 4
    %v846 = vadd.f32 %v838, %v844
    %s847 = sld [smem:[#allocation2 + $0x3]]
    %v848 = vstv %s847
    %v849 = vmul.f32 %v848, %v827
    %v851 = vrot.slane %v849, 7
    %v852 = vrot.slane %v851, 4
    %v854 = vadd.f32 %v846, %v852
    %s855 = sld [smem:[#allocation2 + $0x80]]
    %v856 = vstv %s855
    %v857 = vmul.f32 %v856, %v827
    %s858 = sld [smem:[#allocation2 + $0x81]]
    %v859 = vstv %s858
    %v860 = vmul.f32 %v859, %v827
    %v862 = vrot.slane %v860, 5
    %v863 = vrot.slane %v862, 4
    %v865 = vadd.f32 %v857, %v863
    %s866 = sld [smem:[#allocation2 + $0x82]]
    %v867 = vstv %s866
    %v868 = vmul.f32 %v867, %v827
    %v870 = vrot.slane %v868, 6
    %v871 = vrot.slane %v870, 4
    %v873 = vadd.f32 %v865, %v871
    %s874 = sld [smem:[#allocation2 + $0x83]]
    %v875 = vstv %s874
    %v876 = vmul.f32 %v875, %v827
    %v878 = vrot.slane %v876, 7
    %v879 = vrot.slane %v878, 4
    %v881 = vadd.f32 %v873, %v879
    %s882 = sld [smem:[#allocation2 + $0x100]]
    %v883 = vstv %s882
    %v884 = vmul.f32 %v883, %v827
    %s885 = sld [smem:[#allocation2 + $0x101]]
    %v886 = vstv %s885
    %v887 = vmul.f32 %v886, %v827
    %v889 = vrot.slane %v887, 5
    %v890 = vrot.slane %v889, 4
    %v892 = vadd.f32 %v884, %v890
    %s893 = sld [smem:[#allocation2 + $0x102]]
    %v894 = vstv %s893
    %v895 = vmul.f32 %v894, %v827
    %v897 = vrot.slane %v895, 6
    %v898 = vrot.slane %v897, 4
    %v900 = vadd.f32 %v892, %v898
    %s901 = sld [smem:[#allocation2 + $0x103]]
    %v902 = vstv %s901
    %v903 = vmul.f32 %v902, %v827
    %v905 = vrot.slane %v903, 7
    %v906 = vrot.slane %v905, 4
    %v908 = vadd.f32 %v900, %v906
    %s909 = sld [smem:[#allocation2 + $0x180]]
    %v910 = vstv %s909
    %v911 = vmul.f32 %v910, %v827
    %s912 = sld [smem:[#allocation2 + $0x181]]
    %v913 = vstv %s912
    %v914 = vmul.f32 %v913, %v827
    %v916 = vrot.slane %v914, 5
    %v917 = vrot.slane %v916, 4
    %v919 = vadd.f32 %v911, %v917
    %s920 = sld [smem:[#allocation2 + $0x182]]
    %v921 = vstv %s920
    %v922 = vmul.f32 %v921, %v827
    %v924 = vrot.slane %v922, 6
    %v925 = vrot.slane %v924, 4
    %v927 = vadd.f32 %v919, %v925
    %s928 = sld [smem:[#allocation2 + $0x183]]
    %v929 = vstv %s928
    %v930 = vmul.f32 %v929, %v827
    %v932 = vrot.slane %v930, 7
    %v933 = vrot.slane %v932, 4
    %v935 = vadd.f32 %v927, %v933
    %v937 = vlaneseq
    %v938 = vshrl.u32 %v937, 7
    %v939 = vsub.s32 0, %v938
    %v940 = vrot.slane %v854, %v939
    %v941 = vlaneseq
    %v942 = vshrl.u32 %v941, 7
    %v943 = vsub.s32 4, %v942
    %v944 = vrot.slane %v854, %v943
    %v948 = vlaneseq
    %v949 = vshrl.u32 %v948, 7
    %v950 = vsub.s32 0, %v949
    %v951 = vrot.slane %v881, %v950
    %v952 = vlaneseq
    %v953 = vshrl.u32 %v952, 7
    %v954 = vsub.s32 4, %v953
    %v955 = vrot.slane %v881, %v954
    %v959 = vlaneseq
    %v960 = vshrl.u32 %v959, 7
    %v961 = vsub.s32 0, %v960
    %v962 = vrot.slane %v908, %v961
    %v963 = vlaneseq
    %v964 = vshrl.u32 %v963, 7
    %v965 = vsub.s32 4, %v964
    %v966 = vrot.slane %v908, %v965
    %v970 = vlaneseq
    %v971 = vshrl.u32 %v970, 7
    %v972 = vsub.s32 0, %v971
    %v973 = vrot.slane %v935, %v972
    %v974 = vlaneseq
    %v975 = vshrl.u32 %v974, 7
    %v976 = vsub.s32 4, %v975
    %v977 = vrot.slane %v935, %v976
    %v980 = vsel %vm266, %v940, %v951
    %v981 = vsel %vm266, %v944, %v955
    %v982 = vsel %vm269, %v980, %v962
    %v983 = vsel %vm269, %v981, %v966
    %v984 = vsel %vm272, %v982, %v973
    %v985 = vsel %vm272, %v983, %v977
    %v986 = vsel %vm70, %v984, 0.0
    %v987 = vsel %vm70, %v985, 0.0
    %v988 = vadd.f32 %v986, %v987
    %989 = vadd.xlane.f32.xlu0 %v988
    %v990 = vpop.xlane.xlu0 %989
    %v991 = vrot.slane %v990, 4
    %v992 = vadd.f32 %v990, %v991
    %v993 = vrot.slane %v992, 2
    %v994 = vadd.f32 %v992, %v993
    %v995 = vrot.slane %v994, 1
    %v996 = vadd.f32 %v994, %v995
    %s997 = vtos %v996
    %v998 = vmul.f32 %v984, %v984
    %v999 = vmul.f32 %v985, %v985
    %v1000 = vsel %vm70, %v998, 0.0
    %v1001 = vsel %vm70, %v999, 0.0
    %v1002 = vadd.f32 %v1000, %v1001
    %1003 = vadd.xlane.f32.xlu0 %v1002
    %v1004 = vpop.xlane.xlu0 %1003
    %v1005 = vrot.slane %v1004, 4
    %v1006 = vadd.f32 %v1004, %v1005
    %v1007 = vrot.slane %v1006, 2
    %v1008 = vadd.f32 %v1006, %v1007
    %v1009 = vrot.slane %v1008, 1
    %v1010 = vadd.f32 %v1008, %v1009
    %s1011 = vtos %v1010
    %s1012 = smul.f32 %s997, 0.0009765625
    %s1013 = smul.f32 %s1011, 0.0009765625
    %s1014 = smul.f32 %s1012, %s1012
    %s1015 = ssub.f32 %s1013, %s1014
    %s1016 = smax.f32 %s1015, 0.0
    %v1017 = vstv %s1012
    %v1018 = vsub.f32 %v984, %v1017
    %v1019 = vsub.f32 %v985, %v1017
    %s1020 = sadd.f32 %s1016, 1e-05
    %v1021 = vstv %s1020
    %v1022 = vrsqrt.pop %v1021
    %s1023 = vtos %v1022
    %v1024 = vstv %s1023
    %v1025 = vmul.f32 %v1024, %v56
    %v1027 = vcombine.high %v1025, %v1025
    %v1029 = vmul.f32 %v1018, %v1025
    %v1030 = vmul.f32 %v1019, %v1027
    %v1031 = vadd.f32 %v1029, %v57
    %v1032 = vadd.f32 %v1030, %v321
    %s1033 = sld [smem:[#allocation4]]
    %v1034 = vstv %s1033
    %v1035 = vmul.f32 %v1034, %v1031
    %v1036 = vmul.f32 %v1034, %v1032
    %s1037 = sld [smem:[#allocation4 + $0x1]]
    %v1038 = vstv %s1037
    %v1039 = vmul.f32 %v1038, %v1031
    %v1040 = vmul.f32 %v1038, %v1032
    %v1043 = vrot.slane %v1039, 1
    %v1044 = vrot.slane %v1040, 1
    %v1047 = vadd.f32 %v1035, %v1043
    %v1048 = vadd.f32 %v1036, %v1044
    %s1049 = sld [smem:[#allocation4 + $0x2]]
    %v1050 = vstv %s1049
    %v1051 = vmul.f32 %v1050, %v1031
    %v1052 = vmul.f32 %v1050, %v1032
    %v1055 = vrot.slane %v1051, 2
    %v1056 = vrot.slane %v1052, 2
    %v1059 = vadd.f32 %v1047, %v1055
    %v1060 = vadd.f32 %v1048, %v1056
    %s1061 = sld [smem:[#allocation4 + $0x3]]
    %v1062 = vstv %s1061
    %v1063 = vmul.f32 %v1062, %v1031
    %v1064 = vmul.f32 %v1062, %v1032
    %v1067 = vrot.slane %v1063, 3
    %v1068 = vrot.slane %v1064, 3
    %v1071 = vadd.f32 %v1059, %v1067
    %v1072 = vadd.f32 %v1060, %v1068
    %v1073 = vlaneseq
    %v1074 = vshrl.u32 %v1073, 7
    %v1075 = vsub.s32 0, %v1074
    %v1076 = vrot.slane %v781, %v1075
    %v1077 = vlaneseq
    %v1078 = vshrl.u32 %v1077, 7
    %v1079 = vsub.s32 4, %v1078
    %v1080 = vrot.slane %v781, %v1079
    %v1083 = vadd.f32 %v1071, %v1076
    %v1084 = vadd.f32 %v1072, %v1080
    %s1085 = sld [smem:[#allocation4 + $0x80]]
    %v1086 = vstv %s1085
    %v1087 = vmul.f32 %v1086, %v1031
    %v1088 = vmul.f32 %v1086, %v1032
    %s1089 = sld [smem:[#allocation4 + $0x81]]
    %v1090 = vstv %s1089
    %v1091 = vmul.f32 %v1090, %v1031
    %v1092 = vmul.f32 %v1090, %v1032
    %v1095 = vrot.slane %v1091, 1
    %v1096 = vrot.slane %v1092, 1
    %v1099 = vadd.f32 %v1087, %v1095
    %v1100 = vadd.f32 %v1088, %v1096
    %s1101 = sld [smem:[#allocation4 + $0x82]]
    %v1102 = vstv %s1101
    %v1103 = vmul.f32 %v1102, %v1031
    %v1104 = vmul.f32 %v1102, %v1032
    %v1107 = vrot.slane %v1103, 2
    %v1108 = vrot.slane %v1104, 2
    %v1111 = vadd.f32 %v1099, %v1107
    %v1112 = vadd.f32 %v1100, %v1108
    %s1113 = sld [smem:[#allocation4 + $0x83]]
    %v1114 = vstv %s1113
    %v1115 = vmul.f32 %v1114, %v1031
    %v1116 = vmul.f32 %v1114, %v1032
    %v1119 = vrot.slane %v1115, 3
    %v1120 = vrot.slane %v1116, 3
    %v1123 = vadd.f32 %v1111, %v1119
    %v1124 = vadd.f32 %v1112, %v1120
    %v1125 = vlaneseq
    %v1126 = vshrl.u32 %v1125, 7
    %v1127 = vsub.s32 1, %v1126
    %v1128 = vrot.slane %v781, %v1127
    %v1129 = vlaneseq
    %v1130 = vshrl.u32 %v1129, 7
    %v1131 = vsub.s32 5, %v1130
    %v1132 = vrot.slane %v781, %v1131
    %v1135 = vadd.f32 %v1123, %v1128
    %v1136 = vadd.f32 %v1124, %v1132
    %s1137 = sld [smem:[#allocation4 + $0x100]]
    %v1138 = vstv %s1137
    %v1139 = vmul.f32 %v1138, %v1031
    %v1140 = vmul.f32 %v1138, %v1032
    %s1141 = sld [smem:[#allocation4 + $0x101]]
    %v1142 = vstv %s1141
    %v1143 = vmul.f32 %v1142, %v1031
    %v1144 = vmul.f32 %v1142, %v1032
    %v1147 = vrot.slane %v1143, 1
    %v1148 = vrot.slane %v1144, 1
    %v1151 = vadd.f32 %v1139, %v1147
    %v1152 = vadd.f32 %v1140, %v1148
    %s1153 = sld [smem:[#allocation4 + $0x102]]
    %v1154 = vstv %s1153
    %v1155 = vmul.f32 %v1154, %v1031
    %v1156 = vmul.f32 %v1154, %v1032
    %v1159 = vrot.slane %v1155, 2
    %v1160 = vrot.slane %v1156, 2
    %v1163 = vadd.f32 %v1151, %v1159
    %v1164 = vadd.f32 %v1152, %v1160
    %s1165 = sld [smem:[#allocation4 + $0x103]]
    %v1166 = vstv %s1165
    %v1167 = vmul.f32 %v1166, %v1031
    %v1168 = vmul.f32 %v1166, %v1032
    %v1171 = vrot.slane %v1167, 3
    %v1172 = vrot.slane %v1168, 3
    %v1175 = vadd.f32 %v1163, %v1171
    %v1176 = vadd.f32 %v1164, %v1172
    %v1177 = vlaneseq
    %v1178 = vshrl.u32 %v1177, 7
    %v1179 = vsub.s32 2, %v1178
    %v1180 = vrot.slane %v781, %v1179
    %v1181 = vlaneseq
    %v1182 = vshrl.u32 %v1181, 7
    %v1183 = vsub.s32 6, %v1182
    %v1184 = vrot.slane %v781, %v1183
    %v1187 = vadd.f32 %v1175, %v1180
    %v1188 = vadd.f32 %v1176, %v1184
    %s1189 = sld [smem:[#allocation4 + $0x180]]
    %v1190 = vstv %s1189
    %v1191 = vmul.f32 %v1190, %v1031
    %v1192 = vmul.f32 %v1190, %v1032
    %s1193 = sld [smem:[#allocation4 + $0x181]]
    %v1194 = vstv %s1193
    %v1195 = vmul.f32 %v1194, %v1031
    %v1196 = vmul.f32 %v1194, %v1032
    %v1199 = vrot.slane %v1195, 1
    %v1200 = vrot.slane %v1196, 1
    %v1203 = vadd.f32 %v1191, %v1199
    %v1204 = vadd.f32 %v1192, %v1200
    %s1205 = sld [smem:[#allocation4 + $0x182]]
    %v1206 = vstv %s1205
    %v1207 = vmul.f32 %v1206, %v1031
    %v1208 = vmul.f32 %v1206, %v1032
    %v1211 = vrot.slane %v1207, 2
    %v1212 = vrot.slane %v1208, 2
    %v1215 = vadd.f32 %v1203, %v1211
    %v1216 = vadd.f32 %v1204, %v1212
    %s1217 = sld [smem:[#allocation4 + $0x183]]
    %v1218 = vstv %s1217
    %v1219 = vmul.f32 %v1218, %v1031
    %v1220 = vmul.f32 %v1218, %v1032
    %v1223 = vrot.slane %v1219, 3
    %v1224 = vrot.slane %v1220, 3
    %v1227 = vadd.f32 %v1215, %v1223
    %v1228 = vadd.f32 %v1216, %v1224
    %v1229 = vlaneseq
    %v1230 = vshrl.u32 %v1229, 7
    %v1231 = vsub.s32 3, %v1230
    %v1232 = vrot.slane %v781, %v1231
    %v1233 = vlaneseq
    %v1234 = vshrl.u32 %v1233, 7
    %v1235 = vsub.s32 7, %v1234
    %v1236 = vrot.slane %v781, %v1235
    %v1239 = vadd.f32 %v1227, %v1232
    %v1240 = vadd.f32 %v1228, %v1236
    %v1243 = vrot.slane %v1135, 7
    %v1244 = vrot.slane %v1136, 7
    %v1249 = vrot.slane %v1187, 6
    %v1250 = vrot.slane %v1188, 6
    %v1255 = vrot.slane %v1239, 5
    %v1256 = vrot.slane %v1240, 5
    %v1259 = vsel %vm266, %v1083, %v1243
    %v1260 = vsel %vm266, %v1084, %v1244
    %v1261 = vsel %vm269, %v1259, %v1249
    %v1262 = vsel %vm269, %v1260, %v1250
    %v1263 = vsel %vm272, %v1261, %v1255
    %v1264 = vsel %vm272, %v1262, %v1256
    %v1267 = vcombine.low %v1263, %v1264
    %v1269 = vmul.f32 %v58, %v1267
    %v1271 = vrot.slane %v1269, 5
    %v1272 = vrot.slane %v1271, 4
    %v1274 = vadd.f32 %v1269, %v1272
    %v1275 = vrot.slane %v1269, 6
    %v1276 = vrot.slane %v1275, 4
    %v1278 = vadd.f32 %v1274, %v1276
    %v1279 = vrot.slane %v1269, 7
    %v1280 = vrot.slane %v1279, 4
    %v1282 = vadd.f32 %v1278, %v1280
    %v1283 = vmul.f32 %v59, %v1267
    %v1285 = vrot.slane %v1283, 5
    %v1286 = vrot.slane %v1285, 4
    %v1288 = vadd.f32 %v1283, %v1286
    %v1289 = vrot.slane %v1283, 6
    %v1290 = vrot.slane %v1289, 4
    %v1292 = vadd.f32 %v1288, %v1290
    %v1293 = vrot.slane %v1283, 7
    %v1294 = vrot.slane %v1293, 4
    %v1296 = vadd.f32 %v1292, %v1294
    %v1297 = vmul.f32 %v60, %v1267
    %v1299 = vrot.slane %v1297, 5
    %v1300 = vrot.slane %v1299, 4
    %v1302 = vadd.f32 %v1297, %v1300
    %v1303 = vrot.slane %v1297, 6
    %v1304 = vrot.slane %v1303, 4
    %v1306 = vadd.f32 %v1302, %v1304
    %v1307 = vrot.slane %v1297, 7
    %v1308 = vrot.slane %v1307, 4
    %v1310 = vadd.f32 %v1306, %v1308
    %v1311 = vmul.f32 %v61, %v1267
    %v1313 = vrot.slane %v1311, 5
    %v1314 = vrot.slane %v1313, 4
    %v1316 = vadd.f32 %v1311, %v1314
    %v1317 = vrot.slane %v1311, 6
    %v1318 = vrot.slane %v1317, 4
    %v1320 = vadd.f32 %v1316, %v1318
    %v1321 = vrot.slane %v1311, 7
    %v1322 = vrot.slane %v1321, 4
    %v1324 = vadd.f32 %v1320, %v1322
    %v1325 = vmul.f32 %v62, %v1267
    %v1327 = vrot.slane %v1325, 5
    %v1328 = vrot.slane %v1327, 4
    %v1330 = vadd.f32 %v1325, %v1328
    %v1331 = vrot.slane %v1325, 6
    %v1332 = vrot.slane %v1331, 4
    %v1334 = vadd.f32 %v1330, %v1332
    %v1335 = vrot.slane %v1325, 7
    %v1336 = vrot.slane %v1335, 4
    %v1338 = vadd.f32 %v1334, %v1336
    %v1339 = vmul.f32 %v63, %v1267
    %v1341 = vrot.slane %v1339, 5
    %v1342 = vrot.slane %v1341, 4
    %v1344 = vadd.f32 %v1339, %v1342
    %v1345 = vrot.slane %v1339, 6
    %v1346 = vrot.slane %v1345, 4
    %v1348 = vadd.f32 %v1344, %v1346
    %v1349 = vrot.slane %v1339, 7
    %v1350 = vrot.slane %v1349, 4
    %v1352 = vadd.f32 %v1348, %v1350
    %v1353 = vmul.f32 %v64, %v1267
    %v1355 = vrot.slane %v1353, 5
    %v1356 = vrot.slane %v1355, 4
    %v1358 = vadd.f32 %v1353, %v1356
    %v1359 = vrot.slane %v1353, 6
    %v1360 = vrot.slane %v1359, 4
    %v1362 = vadd.f32 %v1358, %v1360
    %v1363 = vrot.slane %v1353, 7
    %v1364 = vrot.slane %v1363, 4
    %v1366 = vadd.f32 %v1362, %v1364
    %v1367 = vmul.f32 %v65, %v1267
    %v1369 = vrot.slane %v1367, 5
    %v1370 = vrot.slane %v1369, 4
    %v1372 = vadd.f32 %v1367, %v1370
    %v1373 = vrot.slane %v1367, 6
    %v1374 = vrot.slane %v1373, 4
    %v1376 = vadd.f32 %v1372, %v1374
    %v1377 = vrot.slane %v1367, 7
    %v1378 = vrot.slane %v1377, 4
    %v1380 = vadd.f32 %v1376, %v1378
    %v1382 = vlaneseq
    %v1383 = vshrl.u32 %v1382, 7
    %v1384 = vsub.s32 0, %v1383
    %v1385 = vrot.slane %v1282, %v1384
    %v1386 = vlaneseq
    %v1387 = vshrl.u32 %v1386, 7
    %v1388 = vsub.s32 4, %v1387
    %v1389 = vrot.slane %v1282, %v1388
    %v1393 = vlaneseq
    %v1394 = vshrl.u32 %v1393, 7
    %v1395 = vsub.s32 0, %v1394
    %v1396 = vrot.slane %v1296, %v1395
    %v1397 = vlaneseq
    %v1398 = vshrl.u32 %v1397, 7
    %v1399 = vsub.s32 4, %v1398
    %v1400 = vrot.slane %v1296, %v1399
    %v1404 = vlaneseq
    %v1405 = vshrl.u32 %v1404, 7
    %v1406 = vsub.s32 0, %v1405
    %v1407 = vrot.slane %v1310, %v1406
    %v1408 = vlaneseq
    %v1409 = vshrl.u32 %v1408, 7
    %v1410 = vsub.s32 4, %v1409
    %v1411 = vrot.slane %v1310, %v1410
    %v1415 = vlaneseq
    %v1416 = vshrl.u32 %v1415, 7
    %v1417 = vsub.s32 0, %v1416
    %v1418 = vrot.slane %v1324, %v1417
    %v1419 = vlaneseq
    %v1420 = vshrl.u32 %v1419, 7
    %v1421 = vsub.s32 4, %v1420
    %v1422 = vrot.slane %v1324, %v1421
    %v1426 = vlaneseq
    %v1427 = vshrl.u32 %v1426, 7
    %v1428 = vsub.s32 0, %v1427
    %v1429 = vrot.slane %v1338, %v1428
    %v1430 = vlaneseq
    %v1431 = vshrl.u32 %v1430, 7
    %v1432 = vsub.s32 4, %v1431
    %v1433 = vrot.slane %v1338, %v1432
    %v1437 = vlaneseq
    %v1438 = vshrl.u32 %v1437, 7
    %v1439 = vsub.s32 0, %v1438
    %v1440 = vrot.slane %v1352, %v1439
    %v1441 = vlaneseq
    %v1442 = vshrl.u32 %v1441, 7
    %v1443 = vsub.s32 4, %v1442
    %v1444 = vrot.slane %v1352, %v1443
    %v1448 = vlaneseq
    %v1449 = vshrl.u32 %v1448, 7
    %v1450 = vsub.s32 0, %v1449
    %v1451 = vrot.slane %v1366, %v1450
    %v1452 = vlaneseq
    %v1453 = vshrl.u32 %v1452, 7
    %v1454 = vsub.s32 4, %v1453
    %v1455 = vrot.slane %v1366, %v1454
    %v1459 = vlaneseq
    %v1460 = vshrl.u32 %v1459, 7
    %v1461 = vsub.s32 0, %v1460
    %v1462 = vrot.slane %v1380, %v1461
    %v1463 = vlaneseq
    %v1464 = vshrl.u32 %v1463, 7
    %v1465 = vsub.s32 4, %v1464
    %v1466 = vrot.slane %v1380, %v1465
    %v1469 = vsel %vm266, %v1385, %v1396
    %v1470 = vsel %vm266, %v1389, %v1400
    %v1471 = vsel %vm269, %v1469, %v1407
    %v1472 = vsel %vm269, %v1470, %v1411
    %v1473 = vsel %vm272, %v1471, %v1418
    %v1474 = vsel %vm272, %v1472, %v1422
    %v1475 = vsel %vm70, %v1473, %v1429
    %v1476 = vsel %vm70, %v1474, %v1433
    %v1477 = vsel %vm769, %v1475, %v1440
    %v1478 = vsel %vm769, %v1476, %v1444
    %v1479 = vsel %vm772, %v1477, %v1451
    %v1480 = vsel %vm772, %v1478, %v1455
    %v1481 = vsel %vm775, %v1479, %v1462
    %v1482 = vsel %vm775, %v1480, %v1466
    %s1483 = scalar_lea.vmem %s8, 16
    %1484 = vst [vmem:[%s1483] sm:$0xff] %v1481
    %1485 = vst [vmem:[%s1483 + $0x8] sm:$0xff] %v1482
    // Predicated region
    $region42: #{restrictive_block_forward.1} parent=1 // pred_check
      _
    $region43: #{restrictive_block_forward.1} parent=1 // pred_check_branch
      %1487 = sbr.rel (0) target = $region45
    $region44: #{restrictive_block_forward.1} parent=1 // pred_region
      _
    $region45: #{restrictive_block_forward.1} parent=1 // pred_fallthru
      _
    // Predicated region
    $region46: #{restrictive_block_forward.1} parent=1 // pred_check
      _
    $region47: #{restrictive_block_forward.1} parent=1 // pred_check_branch
      %1489 = sbr.rel (0) target = $region49
    $region48: #{restrictive_block_forward.1} parent=1 // pred_region
      _
    $region49: #{restrictive_block_forward.1} parent=1 // pred_fallthru
      _
    %1490 = vsyncpa [#allocation3], 1
    %1491 = vsyncpa [#allocation5], 1

</llo_original>
